<compile_context>
chip_gen: v5e
topology: v5e:2x2
jax: 0.10.0
libtpu: 0.0.40
codegen_flags: <defaults>
</compile_context>

<pallas_src>
import functools

import jax
import jax.numpy as jnp
from jax.experimental import pallas as pl
from jax.experimental.pallas import tpu as pltpu

# Row-tile / image axis is independent -> shard across TensorCores; raise the
# scoped VMEM limit so large row tiles are allowed.
_COMPILER_PARAMS = pltpu.CompilerParams(
    dimension_semantics=("parallel",),
    vmem_limit_bytes=64 * 1024 * 1024,
)


# ----------------------------------------------------------------------------
# Pallas kernels
# ----------------------------------------------------------------------------
def _start_kernel(x_ref, w1_ref, b1_ref, w2_ref, y_ref, y2_ref):
    # Fused: y = SiLU(x @ (W_start*bn_scale) + bn_bias), y2 = x @ (W_conv*bn1_scale)
    # x tile is VMEM-resident once; both branches computed from it.
    x = x_ref[...]
    z = jnp.dot(x, w1_ref[...], preferred_element_type=jnp.float32) + b1_ref[...]
    y_ref[...] = (z * jax.nn.sigmoid(z)).astype(y_ref.dtype)
    y2_ref[...] = jnp.dot(x, w2_ref[...],
                          preferred_element_type=jnp.float32).astype(y2_ref.dtype)


def _conv3x3_core(t, w9_ref, b2_ref, xs_ref, yc_ref, *, H, W, Wp):
    """3x3 SAME conv (+ folded BN bias + SiLU) of dense rows `t` ((H*W, h), f32).

    The zero-padded image lives in the VMEM scratch `xs_ref` with row stride Wp
    (Wp >= W+2, multiple of 8 so the dy-tap offsets stay sublane aligned).  The
    9 taps are contiguous ref-slices of that slab -> 9 accumulated MXU matmuls.
    The dense (H*W, h) result (Wp-stride junk columns stripped) is written to
    the `yc_ref` scratch -- no HBM im2col, no HBM pad, no HBM strip pass.
    """
    h = t.shape[1]
    rows = H * W
    rowsp = H * Wp

    # Zero halo rows + separator columns once per step, then scatter the
    # interior rows (aligned stores when W, Wp are multiples of 8).
    xs_ref[...] = jnp.zeros_like(xs_ref)
    for i in range(H):
        xs_ref[pl.ds((i + 2) * Wp, W), :] = t[i * W:(i + 1) * W, :]

    acc = jnp.zeros((rowsp, h), jnp.float32)
    for dy in range(3):
        for dx in range(3):
            start = (dy + 1) * Wp + dx - 1          # static, >= Wp-1 >= 0
            acc = acc + jnp.dot(xs_ref[pl.ds(start, rowsp), :],
                                w9_ref[3 * dy + dx],
                                preferred_element_type=jnp.float32)
    z = acc + b2_ref[...]
    z = z * jax.nn.sigmoid(z)

    # Strip the junk Wp-stride columns in VMEM (dense (H*W, h) result).
    for i in range(H):
        yc_ref[pl.ds(i * W, W), :] = z[i * Wp:i * Wp + W, :]


def _pw_conv3x3_kernel(y_ref, w1_ref, b1_ref, w9_ref, b2_ref, o_ref,
                       xs_ref, yc_ref, *, H, W, Wp):
    # Fused recur block: SiLU(1x1) feeding a 3x3 SAME conv + SiLU, one HBM
    # read of y and one HBM write of the result per image.
    t = jnp.dot(y_ref[0], w1_ref[...], preferred_element_type=jnp.float32) + b1_ref[...]
    t = t * jax.nn.sigmoid(t)
    _conv3x3_core(t, w9_ref, b2_ref, xs_ref, yc_ref, H=H, W=W, Wp=Wp)
    o_ref[0] = yc_ref[...].astype(o_ref.dtype)


def _pw_conv3x3_tail_kernel(y_ref, y2_ref, w1_ref, b1_ref, w9_ref, b2_ref,
                            we_ref, b1a_ref, b1b_ref, wa_ref, wb_ref, bl_ref,
                            o_ref, xs_ref, yc_ref, *, H, W, Wp):
    # Last recur block fused with the tail: end-conv + concat-as-two-matmuls +
    # BN + LeakyReLU + 1x1 + BN + SiLU, so the last conv output never hits HBM.
    t = jnp.dot(y_ref[0], w1_ref[...], preferred_element_type=jnp.float32) + b1_ref[...]
    t = t * jax.nn.sigmoid(t)
    _conv3x3_core(t, w9_ref, b2_ref, xs_ref, yc_ref, H=H, W=W, Wp=Wp)

    y1 = jnp.dot(yc_ref[...], we_ref[...], preferred_element_type=jnp.float32)
    z1 = y1 + b1a_ref[...]
    z1 = jnp.where(z1 >= 0, z1, 0.01 * z1)
    z2 = y2_ref[0].astype(jnp.float32) + b1b_ref[...]
    z2 = jnp.where(z2 >= 0, z2, 0.01 * z2)
    z = (jnp.dot(z1, wa_ref[...], preferred_element_type=jnp.float32)
         + jnp.dot(z2, wb_ref[...], preferred_element_type=jnp.float32)
         + bl_ref[...])
    o_ref[0] = (z * jax.nn.sigmoid(z)).astype(o_ref.dtype)


def _tail_kernel(y_ref, y2_ref, we_ref, b1a_ref, b1b_ref, wa_ref, wb_ref, bl_ref, o_ref):
    # Standalone fused tail (only used for the degenerate n == 0 case).
    y1 = jnp.dot(y_ref[...].astype(jnp.float32), we_ref[...],
                 preferred_element_type=jnp.float32)
    z1 = y1 + b1a_ref[...]
    z1 = jnp.where(z1 >= 0, z1, 0.01 * z1)
    z2 = y2_ref[...].astype(jnp.float32) + b1b_ref[...]
    z2 = jnp.where(z2 >= 0, z2, 0.01 * z2)
    z = (jnp.dot(z1, wa_ref[...], preferred_element_type=jnp.float32)
         + jnp.dot(z2, wb_ref[...], preferred_element_type=jnp.float32)
         + bl_ref[...])
    o_ref[...] = (z * jax.nn.sigmoid(z)).astype(o_ref.dtype)


# ----------------------------------------------------------------------------
# Wrappers (row-tiled / per-image grids, double-buffered BlockSpecs)
# ----------------------------------------------------------------------------
def _round_up(a, b):
    return -(-a // b) * b


def start_stage(x2d, w1, b1, w2, tm):
    M, cin = x2d.shape
    h = w1.shape[1]
    tm = min(tm, M)
    return pl.pallas_call(
        _start_kernel,
        out_shape=(jax.ShapeDtypeStruct((M, h), x2d.dtype),
                   jax.ShapeDtypeStruct((M, h), x2d.dtype)),
        grid_spec=pltpu.PrefetchScalarGridSpec(
            num_scalar_prefetch=0,
            grid=(pl.cdiv(M, tm),),
            in_specs=[
                pl.BlockSpec((tm, cin), lambda i: (i, 0)),
                pl.BlockSpec((cin, h), lambda i: (0, 0)),
                pl.BlockSpec((1, h), lambda i: (0, 0)),
                pl.BlockSpec((cin, h), lambda i: (0, 0)),
            ],
            out_specs=[pl.BlockSpec((tm, h), lambda i: (i, 0)),
                       pl.BlockSpec((tm, h), lambda i: (i, 0))],
        ),
        compiler_params=_COMPILER_PARAMS,
    )(x2d, w1, b1.reshape(1, h), w2)


def pw_conv3x3(y2d, w1, b1, w9, b2, N, H, W):
    M, h = y2d.shape
    Wp = _round_up(W + 2, 8)                      # sublane-aligned row stride
    y3 = y2d.reshape(N, H * W, h)
    out = pl.pallas_call(
        functools.partial(_pw_conv3x3_kernel, H=H, W=W, Wp=Wp),
        out_shape=jax.ShapeDtypeStruct((N, H * W, h), y2d.dtype),
        grid_spec=pltpu.PrefetchScalarGridSpec(
            num_scalar_prefetch=0,
            grid=(N,),
            in_specs=[
                pl.BlockSpec((1, H * W, h), lambda n: (n, 0, 0)),
                pl.BlockSpec((h, h), lambda n: (0, 0)),
                pl.BlockSpec((1, h), lambda n: (0, 0)),
                pl.BlockSpec((9, h, h), lambda n: (0, 0, 0)),
                pl.BlockSpec((1, h), lambda n: (0, 0)),
            ],
            out_specs=pl.BlockSpec((1, H * W, h), lambda n: (n, 0, 0)),
            scratch_shapes=[pltpu.VMEM(((H + 4) * Wp, h), jnp.float32),
                            pltpu.VMEM((H * W, h), jnp.float32)],
        ),
        compiler_params=_COMPILER_PARAMS,
    )(y3, w1, b1.reshape(1, h), w9, b2.reshape(1, h))
    return out.reshape(M, h)


def pw_conv3x3_tail(y2d, y22d, w1, b1, w9, b2, we, b1a, b1b, wa, wb, bl, N, H, W):
    M, h = y2d.shape
    cout = wa.shape[1]
    Wp = _round_up(W + 2, 8)
    y3 = y2d.reshape(N, H * W, h)
    y23 = y22d.reshape(N, H * W, h)
    out = pl.pallas_call(
        functools.partial(_pw_conv3x3_tail_kernel, H=H, W=W, Wp=Wp),
        out_shape=jax.ShapeDtypeStruct((N, H * W, cout), jnp.float32),
        grid_spec=pltpu.PrefetchScalarGridSpec(
            num_scalar_prefetch=0,
            grid=(N,),
            in_specs=[
                pl.BlockSpec((1, H * W, h), lambda n: (n, 0, 0)),
                pl.BlockSpec((1, H * W, h), lambda n: (n, 0, 0)),
                pl.BlockSpec((h, h), lambda n: (0, 0)),
                pl.BlockSpec((1, h), lambda n: (0, 0)),
                pl.BlockSpec((9, h, h), lambda n: (0, 0, 0)),
                pl.BlockSpec((1, h), lambda n: (0, 0)),
                pl.BlockSpec((h, h), lambda n: (0, 0)),
                pl.BlockSpec((1, h), lambda n: (0, 0)),
                pl.BlockSpec((1, h), lambda n: (0, 0)),
                pl.BlockSpec((h, cout), lambda n: (0, 0)),
                pl.BlockSpec((h, cout), lambda n: (0, 0)),
                pl.BlockSpec((1, cout), lambda n: (0, 0)),
            ],
            out_specs=pl.BlockSpec((1, H * W, cout), lambda n: (n, 0, 0)),
            scratch_shapes=[pltpu.VMEM(((H + 4) * Wp, h), jnp.float32),
                            pltpu.VMEM((H * W, h), jnp.float32)],
        ),
        compiler_params=_COMPILER_PARAMS,
    )(y3, y23, w1, b1.reshape(1, h), w9, b2.reshape(1, h),
      we, b1a.reshape(1, h), b1b.reshape(1, h), wa, wb, bl.reshape(1, cout))
    return out.reshape(M, cout)


def tail_stage(y, y2, w_end_s, b1a, b1b, wa, wb, bl, tm):
    M, h = y.shape
    cout = wa.shape[1]
    tm = min(tm, M)
    return pl.pallas_call(
        _tail_kernel,
        out_shape=jax.ShapeDtypeStruct((M, cout), jnp.float32),
        grid_spec=pltpu.PrefetchScalarGridSpec(
            num_scalar_prefetch=0,
            grid=(pl.cdiv(M, tm),),
            in_specs=[
                pl.BlockSpec((tm, h), lambda i: (i, 0)),
                pl.BlockSpec((tm, h), lambda i: (i, 0)),
                pl.BlockSpec((h, h), lambda i: (0, 0)),
                pl.BlockSpec((1, h), lambda i: (0, 0)),
                pl.BlockSpec((1, h), lambda i: (0, 0)),
                pl.BlockSpec((h, cout), lambda i: (0, 0)),
                pl.BlockSpec((h, cout), lambda i: (0, 0)),
                pl.BlockSpec((1, cout), lambda i: (0, 0)),
            ],
            out_specs=pl.BlockSpec((tm, cout), lambda i: (i, 0)),
        ),
        compiler_params=_COMPILER_PARAMS,
    )(y, y2, w_end_s, b1a.reshape(1, h), b1b.reshape(1, h), wa, wb, bl.reshape(1, cout))


# ----------------------------------------------------------------------------
# Parameter initialization (deterministic, mirrors CSPModule2.__init__ shapes)
# ----------------------------------------------------------------------------
def _bn_fold(key, c, eps=1e-5):
    k1, k2, k3, k4 = jax.random.split(key, 4)
    gamma = 1.0 + 0.1 * jax.random.normal(k1, (c,), jnp.float32)
    beta = 0.1 * jax.random.normal(k2, (c,), jnp.float32)
    mean = 0.1 * jax.random.normal(k3, (c,), jnp.float32)
    var = 0.9 + 0.1 * jnp.abs(jax.random.normal(k4, (c,), jnp.float32))
    scale = gamma / jnp.sqrt(var + eps)
    bias = beta - mean * scale
    return scale, bias


def init_params(key, cin_raw, cout_raw, e=0.5):
    cin = round(cin_raw * e)
    cout = round(cout_raw * e)
    h = cin // 2
    ks = jax.random.split(key, 12)

    def w(k, shape):
        return 0.2 * jax.random.normal(k, shape, jnp.float32)

    p = {"cin": cin, "cout": cout, "hdim": h}
    p["w_start"] = w(ks[0], (cin, h))
    p["s_start"], p["b_start"] = _bn_fold(ks[1], h)
    p["w_m1"] = w(ks[2], (h, h))
    p["s_m1"], p["b_m1"] = _bn_fold(ks[3], h)
    p["w_m2"] = w(ks[4], (3, 3, h, h))           # HWIO
    p["s_m2"], p["b_m2"] = _bn_fold(ks[5], h)
    p["w_end"] = w(ks[6], (h, h))
    p["w_conv"] = w(ks[7], (cin, h))
    p["s_bn1"], p["b_bn1"] = _bn_fold(ks[8], 2 * h)
    p["w_last"] = w(ks[9], (2 * h, cout))
    p["s_last"], p["b_last"] = _bn_fold(ks[10], cout)
    return p


def fold_params(p, act_dtype=jnp.float32):
    """Fold every BN scale into the preceding conv's weight columns.

    Activation-streamed matrices (those multiplying full-size activations) are
    cast to act_dtype; small resident weights and all biases stay f32 so the
    f32 conv scratch / accumulators keep full precision.
    """
    h = p["hdim"]
    f = {}
    f["w_start"] = (p["w_start"] * p["s_start"][None, :]).astype(act_dtype)
    f["b_start"] = p["b_start"]
    f["w_m1"] = (p["w_m1"] * p["s_m1"][None, :]).astype(act_dtype)
    f["b_m1"] = p["b_m1"]
    f["w_m2_9"] = (p["w_m2"] * p["s_m2"][None, None, None, :]).reshape(9, h, h)
    f["b_m2"] = p["b_m2"]
    f["w_conv_s"] = (p["w_conv"] * p["s_bn1"][h:][None, :]).astype(act_dtype)
    f["b1b"] = p["b_bn1"][h:]
    f["w_end_s"] = p["w_end"] * p["s_bn1"][:h][None, :]       # BN1 scale (y1 half)
    f["b1a"] = p["b_bn1"][:h]
    f["w_last_a"] = p["w_last"][:h] * p["s_last"][None, :]
    f["w_last_b"] = p["w_last"][h:] * p["s_last"][None, :]
    f["b_last"] = p["b_last"]
    return f


# ----------------------------------------------------------------------------
# Forward pass
# ----------------------------------------------------------------------------
def csp_module2_forward(x_nchw, params, n=1, tm=2048, act_dtype=jnp.float32):
    # tm budget: double-buffered bytes ~= 2*tm*(cin + 2h)*itemsize (+ weights);
    # 2048 keeps the 1x1 stages a few MiB deep, well under vmem_limit_bytes.
    N, C, H, W = x_nchw.shape
    cout = params["cout"]
    M = N * H * W

    fp = fold_params(params, act_dtype)

    x2d = jnp.transpose(x_nchw, (0, 2, 3, 1)).astype(act_dtype).reshape(M, C)

    # start (1x1 + BN + SiLU) fused with the shortcut branch y2 = conv(x)
    y, y2 = start_stage(x2d, fp["w_start"], fp["b_start"], fp["w_conv_s"], tm)

    if n == 0:
        out2d = tail_stage(y, y2, fp["w_end_s"], fp["b1a"], fp["b1b"],
                           fp["w_last_a"], fp["w_last_b"], fp["b_last"], tm)
    else:
        # main: n repetitions of the SAME (shared-weight) recur_block; each is
        # one fused pw+conv kernel, the last also carries the fused tail.
        for _ in range(n - 1):
            y = pw_conv3x3(y, fp["w_m1"], fp["b_m1"], fp["w_m2_9"], fp["b_m2"],
                           N, H, W)
        out2d = pw_conv3x3_tail(y, y2, fp["w_m1"], fp["b_m1"], fp["w_m2_9"],
                                fp["b_m2"], fp["w_end_s"], fp["b1a"], fp["b1b"],
                                fp["w_last_a"], fp["w_last_b"], fp["b_last"],
                                N, H, W)

    return out2d.reshape(N, H, W, cout).transpose(0, 3, 1, 2)


# ----------------------------------------------------------------------------
# Pure-JAX reference (independent of the kernels) for a correctness check
# ----------------------------------------------------------------------------
def csp_module2_reference(x_nchw, params, n=1):
    x = jnp.transpose(x_nchw, (0, 2, 3, 1)).astype(jnp.float32)

    def conv1x1(t, w):
        return jnp.einsum("nhwc,co->nhwo", t, w)

    def silu(t):
        return t * jax.nn.sigmoid(t)

    def leaky(t):
        return jnp.where(t >= 0, t, 0.01 * t)

    p = params
    y = silu(conv1x1(x, p["w_start"]) * p["s_start"] + p["b_start"])
    for _ in range(n):
        y = silu(conv1x1(y, p["w_m1"]) * p["s_m1"] + p["b_m1"])
        y = jax.lax.conv_general_dilated(
            y, p["w_m2"], window_strides=(1, 1), padding="SAME",
            dimension_numbers=("NHWC", "HWIO", "NHWC"))
        y = silu(y * p["s_m2"] + p["b_m2"])
    y1 = conv1x1(y, p["w_end"])
    y2 = conv1x1(x, p["w_conv"])
    z = jnp.concatenate([y1, y2], axis=-1)
    z = leaky(z * p["s_bn1"] + p["b_bn1"])
    out = silu(conv1x1(z, p["w_last"]) * p["s_last"] + p["b_last"])
    return out.transpose(0, 3, 1, 2)


# ----------------------------------------------------------------------------
if __name__ == "__main__":
    # CSPModule2(cin=8, cout=8, e=0.5, n=1) -> internal cin=4, cout=4, hdim=2
    key = jax.random.PRNGKey(0)
    kx, kp = jax.random.split(key)
    params = init_params(kp, cin_raw=8, cout_raw=8, e=0.5)

    N, C, H, W = 2, params["cin"], 16, 16
    x = jax.random.normal(kx, (N, C, H, W), jnp.float32)

    ref = jax.block_until_ready(csp_module2_reference(x, params, n=1))

    # f32 path: strict check against the pure-JAX reference.
    out = jax.block_until_ready(csp_module2_forward(x, params, n=1))
    assert out.shape == (N, params["cout"], H, W), out.shape
    assert jnp.allclose(out, ref, rtol=1e-4, atol=1e-4), float(jnp.max(jnp.abs(out - ref)))

    # bf16 activation path (halves HBM traffic); looser tolerance.
    out_bf = jax.block_until_ready(
        csp_module2_forward(x, params, n=1, act_dtype=jnp.bfloat16))
    assert jnp.allclose(out_bf.astype(jnp.float32), ref, rtol=5e-2, atol=5e-2), \
        float(jnp.max(jnp.abs(out_bf.astype(jnp.float32) - ref)))

    print("KERNEL_OK")
</pallas_src>

<mosaic_0001>
module attributes {stable_mosaic.version = 11 : i64} {
  func.func @_start_kernel(%arg0: i32, %arg1: memref<512x4xf32, #tpu.memory_space<vmem>>, %arg2: memref<4x2xf32, #tpu.memory_space<vmem>>, %arg3: memref<1x2xf32, #tpu.memory_space<vmem>>, %arg4: memref<4x2xf32, #tpu.memory_space<vmem>>, %arg5: memref<512x2xf32, #tpu.memory_space<vmem>>, %arg6: memref<512x2xf32, #tpu.memory_space<vmem>>) attributes {dimension_semantics = [#tpu.dimension_semantics<parallel>], iteration_bounds = array<i64: 1>, scalar_prefetch = 0 : i64, scratch_operands = 0 : i64, tpu.core_type = #tpu.core_type<tc>, window_params = [{transform_indices = @transform_0, window_bounds = array<i64: 512, 4>}, {pipeline_mode = #tpu.pipeline_mode<synchronous>, transform_indices = @transform_1, window_bounds = array<i64: 4, 2>}, {pipeline_mode = #tpu.pipeline_mode<synchronous>, transform_indices = @transform_2, window_bounds = array<i64: 1, 2>}, {pipeline_mode = #tpu.pipeline_mode<synchronous>, transform_indices = @transform_3, window_bounds = array<i64: 4, 2>}, {transform_indices = @transform_4, window_bounds = array<i64: 512, 2>}, {transform_indices = @transform_5, window_bounds = array<i64: 512, 2>}]} {
    %c0 = arith.constant 0 : index
    %c0_0 = arith.constant 0 : index
    %0 = vector.load %arg1[%c0, %c0_0] : memref<512x4xf32, #tpu.memory_space<vmem>>, vector<512x4xf32>
    %c0_1 = arith.constant 0 : index
    %c0_2 = arith.constant 0 : index
    %1 = vector.load %arg2[%c0_1, %c0_2] : memref<4x2xf32, #tpu.memory_space<vmem>>, vector<4x2xf32>
    %cst = arith.constant dense<0.000000e+00> : vector<512x2xf32>
    %2 = tpu.matmul %0, %1, %cst {dimension_numbers = #tpu.dot_dimension_numbers<[1], [0], [0], [1], [0, 0, 1, 1], [], []>} : vector<512x4xf32>, vector<4x2xf32>, vector<512x2xf32> -> vector<512x2xf32>
    %c0_3 = arith.constant 0 : index
    %c0_4 = arith.constant 0 : index
    %3 = vector.load %arg3[%c0_3, %c0_4] : memref<1x2xf32, #tpu.memory_space<vmem>>, vector<1x2xf32>
    %4 = vector.broadcast %3 : vector<1x2xf32> to vector<512x2xf32>
    %5 = arith.addf %2, %4 : vector<512x2xf32>
    %6 = arith.negf %5 : vector<512x2xf32>
    %7 = math.exp %6 : vector<512x2xf32>
    %cst_5 = arith.constant 1.000000e+00 : f32
    %8 = vector.broadcast %cst_5 : f32 to vector<512x2xf32>
    %9 = arith.addf %8, %7 : vector<512x2xf32>
    %10 = arith.divf %8, %9 : vector<512x2xf32>
    %11 = arith.mulf %5, %10 : vector<512x2xf32>
    %c0_6 = arith.constant 0 : index
    %c0_7 = arith.constant 0 : index
    %12 = vector.load %arg5[%c0_6, %c0_7] : memref<512x2xf32, #tpu.memory_space<vmem>>, vector<512x2xf32>
    tpu.vector_store %arg5[%c0_6, %c0_7], %11 {strides = array<i32>} : memref<512x2xf32, #tpu.memory_space<vmem>>, vector<512x2xf32>,
    %c0_8 = arith.constant 0 : index
    %c0_9 = arith.constant 0 : index
    %13 = vector.load %arg4[%c0_8, %c0_9] : memref<4x2xf32, #tpu.memory_space<vmem>>, vector<4x2xf32>
    %cst_10 = arith.constant dense<0.000000e+00> : vector<512x2xf32>
    %14 = tpu.matmul %0, %13, %cst_10 {dimension_numbers = #tpu.dot_dimension_numbers<[1], [0], [0], [1], [0, 0, 1, 1], [], []>} : vector<512x4xf32>, vector<4x2xf32>, vector<512x2xf32> -> vector<512x2xf32>
    %c0_11 = arith.constant 0 : index
    %c0_12 = arith.constant 0 : index
    %15 = vector.load %arg6[%c0_11, %c0_12] : memref<512x2xf32, #tpu.memory_space<vmem>>, vector<512x2xf32>
    tpu.vector_store %arg6[%c0_11, %c0_12], %14 {strides = array<i32>} : memref<512x2xf32, #tpu.memory_space<vmem>>, vector<512x2xf32>,
    return
  }
  func.func @transform_0(%arg0: i32) -> (i32, i32) {
    %c0_i32 = arith.constant 0 : i32
    %c0_i32_0 = arith.constant 0 : i32
    return %arg0, %c0_i32 : i32, i32
  }
  func.func @transform_1(%arg0: i32) -> (i32, i32) {
    %c0_i32 = arith.constant 0 : i32
    %c0_i32_0 = arith.constant 0 : i32
    %c0_i32_1 = arith.constant 0 : i32
    return %c0_i32, %c0_i32_0 : i32, i32
  }
  func.func @transform_2(%arg0: i32) -> (i32, i32) {
    %c0_i32 = arith.constant 0 : i32
    %c0_i32_0 = arith.constant 0 : i32
    %c0_i32_1 = arith.constant 0 : i32
    return %c0_i32, %c0_i32_0 : i32, i32
  }
  func.func @transform_3(%arg0: i32) -> (i32, i32) {
    %c0_i32 = arith.constant 0 : i32
    %c0_i32_0 = arith.constant 0 : i32
    %c0_i32_1 = arith.constant 0 : i32
    return %c0_i32, %c0_i32_0 : i32, i32
  }
  func.func @transform_4(%arg0: i32) -> (i32, i32) {
    %c0_i32 = arith.constant 0 : i32
    %c0_i32_0 = arith.constant 0 : i32
    return %arg0, %c0_i32 : i32, i32
  }
  func.func @transform_5(%arg0: i32) -> (i32, i32) {
    %c0_i32 = arith.constant 0 : i32
    %c0_i32_0 = arith.constant 0 : i32
    return %arg0, %c0_i32 : i32, i32
  }
}

</mosaic_0001>

<llo_original>
// kernel: tpu_custom_call.1
$region0: #{tpu_custom_call.1}
  #allocation0 [shape = 'u32[]', space=smem, size = 0x4, offset = 0x4, fixed_abs, tag = 'smem constant byte address 0x4 - core index']
  #allocation1 [shape = 'u32[72,128]{1,0:T(1,128)}', space=vmem, size = 0x9000, scoped, tag = 'internal scratch']
  %s0 = inlined_call_operand.vmem [shape: f32[512,4], index: 0, kind: input, shape index: {}]
  %s1 = inlined_call_operand.vmem [shape: f32[4,2], index: 1, kind: input, shape index: {}]
  %s2 = inlined_call_operand.vmem [shape: f32[1,2], index: 2, kind: input, shape index: {}]
  %s3 = inlined_call_operand.vmem [shape: f32[4,2], index: 3, kind: input, shape index: {}]
  %s4 = inlined_call_operand.vmem [shape: f32[512,2], index: 4, kind: output, shape index: {0}]
  %s5 = inlined_call_operand.vmem [shape: f32[512,2], index: 5, kind: output, shape index: {1}]
  %6 = xla_tuple %s4, %s5
  %s7 = sld [smem:[#allocation0]]
  $region34: #{tpu_custom_call.1} parent=0
    _
  %s9 = ssub.s32 1, %s7
  %s10 = scalar_select 0, %s9, %s7
  // Predicated region
  $region2: #{tpu_custom_call.1} parent=0 // pred_check
    _
  $region3: #{tpu_custom_call.1} parent=0 // pred_check_branch
    %12 = sbr.rel (0) target = $region5
  $region4: #{tpu_custom_call.1} parent=0 // pred_region
    _
  $region5: #{tpu_custom_call.1} parent=0 // pred_fallthru
    _
  // Predicated region
  $region6: #{tpu_custom_call.1} parent=0 // pred_check
    _
  $region7: #{tpu_custom_call.1} parent=0 // pred_check_branch
    %14 = sbr.rel (0) target = $region9
  $region8: #{tpu_custom_call.1} parent=0 // pred_region
    _
  $region9: #{tpu_custom_call.1} parent=0 // pred_fallthru
    _
  // Predicated region
  $region10: #{tpu_custom_call.1} parent=0 // pred_check
    _
  $region11: #{tpu_custom_call.1} parent=0 // pred_check_branch
    %16 = sbr.rel (0) target = $region13
  $region12: #{tpu_custom_call.1} parent=0 // pred_region
    _
  $region13: #{tpu_custom_call.1} parent=0 // pred_fallthru
    _
  // Predicated region
  $region14: #{tpu_custom_call.1} parent=0 // pred_check
    _
  $region15: #{tpu_custom_call.1} parent=0 // pred_check_branch
    %18 = sbr.rel (0) target = $region17
  $region16: #{tpu_custom_call.1} parent=0 // pred_region
    _
  $region17: #{tpu_custom_call.1} parent=0 // pred_fallthru
    _
  %v19 = vld [vmem:[%s0] sm:$0xff]
  %v20 = vld [vmem:[%s0 + $0x8] sm:$0xff]
  %v21 = vld [vmem:[%s0 + $0x10] sm:$0xff]
  %v22 = vld [vmem:[%s0 + $0x18] sm:$0xff]
  %v23 = vld [vmem:[%s0 + $0x20] sm:$0xff]
  %v24 = vld [vmem:[%s0 + $0x28] sm:$0xff]
  %v25 = vld [vmem:[%s0 + $0x30] sm:$0xff]
  %v26 = vld [vmem:[%s0 + $0x38] sm:$0xff]
  %v27 = vld [vmem:[%s0 + $0x40] sm:$0xff]
  %v28 = vld [vmem:[%s0 + $0x48] sm:$0xff]
  %v29 = vld [vmem:[%s0 + $0x50] sm:$0xff]
  %v30 = vld [vmem:[%s0 + $0x58] sm:$0xff]
  %v31 = vld [vmem:[%s0 + $0x60] sm:$0xff]
  %v32 = vld [vmem:[%s0 + $0x68] sm:$0xff]
  %v33 = vld [vmem:[%s0 + $0x70] sm:$0xff]
  %v34 = vld [vmem:[%s0 + $0x78] sm:$0xff]
  %v35 = vld [vmem:[%s0 + $0x80] sm:$0xff]
  %v36 = vld [vmem:[%s0 + $0x88] sm:$0xff]
  %v37 = vld [vmem:[%s0 + $0x90] sm:$0xff]
  %v38 = vld [vmem:[%s0 + $0x98] sm:$0xff]
  %v39 = vld [vmem:[%s0 + $0xa0] sm:$0xff]
  %v40 = vld [vmem:[%s0 + $0xa8] sm:$0xff]
  %v41 = vld [vmem:[%s0 + $0xb0] sm:$0xff]
  %v42 = vld [vmem:[%s0 + $0xb8] sm:$0xff]
  %v43 = vld [vmem:[%s0 + $0xc0] sm:$0xff]
  %v44 = vld [vmem:[%s0 + $0xc8] sm:$0xff]
  %v45 = vld [vmem:[%s0 + $0xd0] sm:$0xff]
  %v46 = vld [vmem:[%s0 + $0xd8] sm:$0xff]
  %v47 = vld [vmem:[%s0 + $0xe0] sm:$0xff]
  %v48 = vld [vmem:[%s0 + $0xe8] sm:$0xff]
  %v49 = vld [vmem:[%s0 + $0xf0] sm:$0xff]
  %v50 = vld [vmem:[%s0 + $0xf8] sm:$0xff]
  %v51 = vld [vmem:[%s0 + $0x100] sm:$0xff]
  %v52 = vld [vmem:[%s0 + $0x108] sm:$0xff]
  %v53 = vld [vmem:[%s0 + $0x110] sm:$0xff]
  %v54 = vld [vmem:[%s0 + $0x118] sm:$0xff]
  %v55 = vld [vmem:[%s0 + $0x120] sm:$0xff]
  %v56 = vld [vmem:[%s0 + $0x128] sm:$0xff]
  %v57 = vld [vmem:[%s0 + $0x130] sm:$0xff]
  %v58 = vld [vmem:[%s0 + $0x138] sm:$0xff]
  %v59 = vld [vmem:[%s0 + $0x140] sm:$0xff]
  %v60 = vld [vmem:[%s0 + $0x148] sm:$0xff]
  %v61 = vld [vmem:[%s0 + $0x150] sm:$0xff]
  %v62 = vld [vmem:[%s0 + $0x158] sm:$0xff]
  %v63 = vld [vmem:[%s0 + $0x160] sm:$0xff]
  %v64 = vld [vmem:[%s0 + $0x168] sm:$0xff]
  %v65 = vld [vmem:[%s0 + $0x170] sm:$0xff]
  %v66 = vld [vmem:[%s0 + $0x178] sm:$0xff]
  %v67 = vld [vmem:[%s0 + $0x180] sm:$0xff]
  %v68 = vld [vmem:[%s0 + $0x188] sm:$0xff]
  %v69 = vld [vmem:[%s0 + $0x190] sm:$0xff]
  %v70 = vld [vmem:[%s0 + $0x198] sm:$0xff]
  %v71 = vld [vmem:[%s0 + $0x1a0] sm:$0xff]
  %v72 = vld [vmem:[%s0 + $0x1a8] sm:$0xff]
  %v73 = vld [vmem:[%s0 + $0x1b0] sm:$0xff]
  %v74 = vld [vmem:[%s0 + $0x1b8] sm:$0xff]
  %v75 = vld [vmem:[%s0 + $0x1c0] sm:$0xff]
  %v76 = vld [vmem:[%s0 + $0x1c8] sm:$0xff]
  %v77 = vld [vmem:[%s0 + $0x1d0] sm:$0xff]
  %v78 = vld [vmem:[%s0 + $0x1d8] sm:$0xff]
  %v79 = vld [vmem:[%s0 + $0x1e0] sm:$0xff]
  %v80 = vld [vmem:[%s0 + $0x1e8] sm:$0xff]
  %v81 = vld [vmem:[%s0 + $0x1f0] sm:$0xff]
  %v82 = vld [vmem:[%s0 + $0x1f8] sm:$0xff]
  %v83 = vld [vmem:[%s1] sm:$0xf]
  %v84 = vld [vmem:[%s2] sm:$0x1]
  %v86 = vperm.slane %v84, 0
  %vm88 = vcmask 31744
  %v90 = vsel %vm88, %v19, 0
  %v93 = vsel %vm88, %v20, 0
  %v96 = vsel %vm88, %v21, 0
  %v99 = vsel %vm88, %v22, 0
  %v102 = vsel %vm88, %v23, 0
  %v105 = vsel %vm88, %v24, 0
  %v108 = vsel %vm88, %v25, 0
  %v111 = vsel %vm88, %v26, 0
  %v114 = vsel %vm88, %v27, 0
  %v117 = vsel %vm88, %v28, 0
  %v120 = vsel %vm88, %v29, 0
  %v123 = vsel %vm88, %v30, 0
  %v126 = vsel %vm88, %v31, 0
  %v129 = vsel %vm88, %v32, 0
  %v132 = vsel %vm88, %v33, 0
  %v135 = vsel %vm88, %v34, 0
  %v138 = vsel %vm88, %v35, 0
  %v141 = vsel %vm88, %v36, 0
  %v144 = vsel %vm88, %v37, 0
  %v147 = vsel %vm88, %v38, 0
  %v150 = vsel %vm88, %v39, 0
  %v153 = vsel %vm88, %v40, 0
  %v156 = vsel %vm88, %v41, 0
  %v159 = vsel %vm88, %v42, 0
  %v162 = vsel %vm88, %v43, 0
  %v165 = vsel %vm88, %v44, 0
  %v168 = vsel %vm88, %v45, 0
  %v171 = vsel %vm88, %v46, 0
  %v174 = vsel %vm88, %v47, 0
  %v177 = vsel %vm88, %v48, 0
  %v180 = vsel %vm88, %v49, 0
  %v183 = vsel %vm88, %v50, 0
  %v186 = vsel %vm88, %v51, 0
  %v189 = vsel %vm88, %v52, 0
  %v192 = vsel %vm88, %v53, 0
  %v195 = vsel %vm88, %v54, 0
  %v198 = vsel %vm88, %v55, 0
  %v201 = vsel %vm88, %v56, 0
  %v204 = vsel %vm88, %v57, 0
  %v207 = vsel %vm88, %v58, 0
  %v210 = vsel %vm88, %v59, 0
  %v213 = vsel %vm88, %v60, 0
  %v216 = vsel %vm88, %v61, 0
  %v219 = vsel %vm88, %v62, 0
  %v222 = vsel %vm88, %v63, 0
  %v225 = vsel %vm88, %v64, 0
  %v228 = vsel %vm88, %v65, 0
  %v231 = vsel %vm88, %v66, 0
  %v234 = vsel %vm88, %v67, 0
  %v237 = vsel %vm88, %v68, 0
  %v240 = vsel %vm88, %v69, 0
  %v243 = vsel %vm88, %v70, 0
  %v246 = vsel %vm88, %v71, 0
  %v249 = vsel %vm88, %v72, 0
  %v252 = vsel %vm88, %v73, 0
  %v255 = vsel %vm88, %v74, 0
  %v258 = vsel %vm88, %v75, 0
  %v261 = vsel %vm88, %v76, 0
  %v264 = vsel %vm88, %v77, 0
  %v267 = vsel %vm88, %v78, 0
  %v270 = vsel %vm88, %v79, 0
  %v273 = vsel %vm88, %v80, 0
  %v276 = vsel %vm88, %v81, 0
  %v279 = vsel %vm88, %v82, 0
  %vm281 = vcmask 1043456
  %v283 = vsel %vm281, %v83, 0
  %285 = vmatpush.msra.mxu0 0.0
  %286 = vmatpush.msra.mxu0 0.0
  %287 = vmatpush.msra.mxu0 0.0
  %288 = vmatpush.msra.mxu0 0.0
  %289 = vmatpush.msra.mxu0 0.0
  %290 = vmatpush.msra.mxu0 0.0
  %291 = vmatpush.msra.mxu0 0.0
  %292 = vmatpush.msra.mxu0 0.0
  %293 = vmatpush.msra.mxu0 0.0
  %294 = vmatpush.msra.mxu0 0.0
  %295 = vmatpush.msra.mxu0 0.0
  %296 = vmatpush.msra.mxu0 0.0
  %297 = vmatpush.msra.mxu0 0.0
  %298 = vmatpush.msra.mxu0 0.0
  %299 = vmatpush.msra.mxu0 0.0
  %300 = vmatpush.msra.mxu0 %v283
  %301 = vmatmul.f32.gmra.mxu0 %v90
  %v302 = vpop.f32.mrf.mxu0
  %v303 = vadd.f32 %v86, %v302
  %304 = vmatmul.f32.gmra.mxu0 %v93
  %v305 = vpop.f32.mrf.mxu0
  %v306 = vadd.f32 %v86, %v305
  %307 = vmatmul.f32.gmra.mxu0 %v96
  %v308 = vpop.f32.mrf.mxu0
  %v309 = vadd.f32 %v86, %v308
  %310 = vmatmul.f32.gmra.mxu0 %v99
  %v311 = vpop.f32.mrf.mxu0
  %v312 = vadd.f32 %v86, %v311
  %313 = vmatmul.f32.gmra.mxu0 %v102
  %v314 = vpop.f32.mrf.mxu0
  %v315 = vadd.f32 %v86, %v314
  %316 = vmatmul.f32.gmra.mxu0 %v105
  %v317 = vpop.f32.mrf.mxu0
  %v318 = vadd.f32 %v86, %v317
  %319 = vmatmul.f32.gmra.mxu0 %v108
  %v320 = vpop.f32.mrf.mxu0
  %v321 = vadd.f32 %v86, %v320
  %322 = vmatmul.f32.gmra.mxu0 %v111
  %v323 = vpop.f32.mrf.mxu0
  %v324 = vadd.f32 %v86, %v323
  %325 = vmatmul.f32.gmra.mxu0 %v114
  %v326 = vpop.f32.mrf.mxu0
  %v327 = vadd.f32 %v86, %v326
  %328 = vmatmul.f32.gmra.mxu0 %v117
  %v329 = vpop.f32.mrf.mxu0
  %v330 = vadd.f32 %v86, %v329
  %331 = vmatmul.f32.gmra.mxu0 %v120
  %v332 = vpop.f32.mrf.mxu0
  %v333 = vadd.f32 %v86, %v332
  %334 = vmatmul.f32.gmra.mxu0 %v123
  %v335 = vpop.f32.mrf.mxu0
  %v336 = vadd.f32 %v86, %v335
  %337 = vmatmul.f32.gmra.mxu0 %v126
  %v338 = vpop.f32.mrf.mxu0
  %v339 = vadd.f32 %v86, %v338
  %340 = vmatmul.f32.gmra.mxu0 %v129
  %v341 = vpop.f32.mrf.mxu0
  %v342 = vadd.f32 %v86, %v341
  %343 = vmatmul.f32.gmra.mxu0 %v132
  %v344 = vpop.f32.mrf.mxu0
  %v345 = vadd.f32 %v86, %v344
  %346 = vmatmul.f32.gmra.mxu0 %v135
  %v347 = vpop.f32.mrf.mxu0
  %v348 = vadd.f32 %v86, %v347
  %349 = vmatmul.f32.gmra.mxu0 %v138
  %v350 = vpop.f32.mrf.mxu0
  %v351 = vadd.f32 %v86, %v350
  %352 = vmatmul.f32.gmra.mxu0 %v141
  %v353 = vpop.f32.mrf.mxu0
  %v354 = vadd.f32 %v86, %v353
  %355 = vmatmul.f32.gmra.mxu0 %v144
  %v356 = vpop.f32.mrf.mxu0
  %v357 = vadd.f32 %v86, %v356
  %358 = vmatmul.f32.gmra.mxu0 %v147
  %v359 = vpop.f32.mrf.mxu0
  %v360 = vadd.f32 %v86, %v359
  %361 = vmatmul.f32.gmra.mxu0 %v150
  %v362 = vpop.f32.mrf.mxu0
  %v363 = vadd.f32 %v86, %v362
  %364 = vmatmul.f32.gmra.mxu0 %v153
  %v365 = vpop.f32.mrf.mxu0
  %v366 = vadd.f32 %v86, %v365
  %367 = vmatmul.f32.gmra.mxu0 %v156
  %v368 = vpop.f32.mrf.mxu0
  %v369 = vadd.f32 %v86, %v368
  %370 = vmatmul.f32.gmra.mxu0 %v159
  %v371 = vpop.f32.mrf.mxu0
  %v372 = vadd.f32 %v86, %v371
  %373 = vmatmul.f32.gmra.mxu0 %v162
  %v374 = vpop.f32.mrf.mxu0
  %v375 = vadd.f32 %v86, %v374
  %376 = vmatmul.f32.gmra.mxu0 %v165
  %v377 = vpop.f32.mrf.mxu0
  %v378 = vadd.f32 %v86, %v377
  %379 = vmatmul.f32.gmra.mxu0 %v168
  %v380 = vpop.f32.mrf.mxu0
  %v381 = vadd.f32 %v86, %v380
  %382 = vmatmul.f32.gmra.mxu0 %v171
  %v383 = vpop.f32.mrf.mxu0
  %v384 = vadd.f32 %v86, %v383
  %385 = vmatmul.f32.gmra.mxu0 %v174
  %v386 = vpop.f32.mrf.mxu0
  %v387 = vadd.f32 %v86, %v386
  %388 = vmatmul.f32.gmra.mxu0 %v177
  %v389 = vpop.f32.mrf.mxu0
  %v390 = vadd.f32 %v86, %v389
  %391 = vmatmul.f32.gmra.mxu0 %v180
  %v392 = vpop.f32.mrf.mxu0
  %v393 = vadd.f32 %v86, %v392
  %394 = vmatmul.f32.gmra.mxu0 %v183
  %v395 = vpop.f32.mrf.mxu0
  %v396 = vadd.f32 %v86, %v395
  %397 = vmatmul.f32.gmra.mxu0 %v186
  %v398 = vpop.f32.mrf.mxu0
  %v399 = vadd.f32 %v86, %v398
  %400 = vmatmul.f32.gmra.mxu0 %v189
  %v401 = vpop.f32.mrf.mxu0
  %v402 = vadd.f32 %v86, %v401
  %403 = vmatmul.f32.gmra.mxu0 %v192
  %v404 = vpop.f32.mrf.mxu0
  %v405 = vadd.f32 %v86, %v404
  %406 = vmatmul.f32.gmra.mxu0 %v195
  %v407 = vpop.f32.mrf.mxu0
  %v408 = vadd.f32 %v86, %v407
  %409 = vmatmul.f32.gmra.mxu0 %v198
  %v410 = vpop.f32.mrf.mxu0
  %v411 = vadd.f32 %v86, %v410
  %412 = vmatmul.f32.gmra.mxu0 %v201
  %v413 = vpop.f32.mrf.mxu0
  %v414 = vadd.f32 %v86, %v413
  %415 = vmatmul.f32.gmra.mxu0 %v204
  %v416 = vpop.f32.mrf.mxu0
  %v417 = vadd.f32 %v86, %v416
  %418 = vmatmul.f32.gmra.mxu0 %v207
  %v419 = vpop.f32.mrf.mxu0
  %v420 = vadd.f32 %v86, %v419
  %421 = vmatmul.f32.gmra.mxu0 %v210
  %v422 = vpop.f32.mrf.mxu0
  %v423 = vadd.f32 %v86, %v422
  %424 = vmatmul.f32.gmra.mxu0 %v213
  %v425 = vpop.f32.mrf.mxu0
  %v426 = vadd.f32 %v86, %v425
  %427 = vmatmul.f32.gmra.mxu0 %v216
  %v428 = vpop.f32.mrf.mxu0
  %v429 = vadd.f32 %v86, %v428
  %430 = vmatmul.f32.gmra.mxu0 %v219
  %v431 = vpop.f32.mrf.mxu0
  %v432 = vadd.f32 %v86, %v431
  %433 = vmatmul.f32.gmra.mxu0 %v222
  %v434 = vpop.f32.mrf.mxu0
  %v435 = vadd.f32 %v86, %v434
  %436 = vmatmul.f32.gmra.mxu0 %v225
  %v437 = vpop.f32.mrf.mxu0
  %v438 = vadd.f32 %v86, %v437
  %439 = vmatmul.f32.gmra.mxu0 %v228
  %v440 = vpop.f32.mrf.mxu0
  %v441 = vadd.f32 %v86, %v440
  %442 = vmatmul.f32.gmra.mxu0 %v231
  %v443 = vpop.f32.mrf.mxu0
  %v444 = vadd.f32 %v86, %v443
  %445 = vmatmul.f32.gmra.mxu0 %v234
  %v446 = vpop.f32.mrf.mxu0
  %v447 = vadd.f32 %v86, %v446
  %448 = vmatmul.f32.gmra.mxu0 %v237
  %v449 = vpop.f32.mrf.mxu0
  %v450 = vadd.f32 %v86, %v449
  %451 = vmatmul.f32.gmra.mxu0 %v240
  %v452 = vpop.f32.mrf.mxu0
  %v453 = vadd.f32 %v86, %v452
  %454 = vmatmul.f32.gmra.mxu0 %v243
  %v455 = vpop.f32.mrf.mxu0
  %v456 = vadd.f32 %v86, %v455
  %457 = vmatmul.f32.gmra.mxu0 %v246
  %v458 = vpop.f32.mrf.mxu0
  %v459 = vadd.f32 %v86, %v458
  %460 = vmatmul.f32.gmra.mxu0 %v249
  %v461 = vpop.f32.mrf.mxu0
  %v462 = vadd.f32 %v86, %v461
  %463 = vmatmul.f32.gmra.mxu0 %v252
  %v464 = vpop.f32.mrf.mxu0
  %v465 = vadd.f32 %v86, %v464
  %466 = vmatmul.f32.gmra.mxu0 %v255
  %v467 = vpop.f32.mrf.mxu0
  %v468 = vadd.f32 %v86, %v467
  %469 = vmatmul.f32.gmra.mxu0 %v258
  %v470 = vpop.f32.mrf.mxu0
  %v471 = vadd.f32 %v86, %v470
  %472 = vmatmul.f32.gmra.mxu0 %v261
  %v473 = vpop.f32.mrf.mxu0
  %v474 = vadd.f32 %v86, %v473
  %475 = vmatmul.f32.gmra.mxu0 %v264
  %v476 = vpop.f32.mrf.mxu0
  %v477 = vadd.f32 %v86, %v476
  %478 = vmatmul.f32.gmra.mxu0 %v267
  %v479 = vpop.f32.mrf.mxu0
  %v480 = vadd.f32 %v86, %v479
  %481 = vmatmul.f32.gmra.mxu0 %v270
  %v482 = vpop.f32.mrf.mxu0
  %v483 = vadd.f32 %v86, %v482
  %484 = vmatmul.f32.gmra.mxu0 %v273
  %v485 = vpop.f32.mrf.mxu0
  %v486 = vadd.f32 %v86, %v485
  %487 = vmatmul.f32.gmra.mxu0 %v276
  %v488 = vpop.f32.mrf.mxu0
  %v489 = vadd.f32 %v86, %v488
  %490 = vmatmul.f32.gmra.mxu0 %v279
  %v491 = vpop.f32.mrf.mxu0
  %v492 = vadd.f32 %v86, %v491
  %493 = vdwg.mxu0
  %v494 = vxor.u32 %v303, 2147483648
  %v495 = vxor.u32 %v306, 2147483648
  %v496 = vxor.u32 %v309, 2147483648
  %v497 = vxor.u32 %v312, 2147483648
  %v498 = vxor.u32 %v315, 2147483648
  %v499 = vxor.u32 %v318, 2147483648
  %v500 = vxor.u32 %v321, 2147483648
  %v501 = vxor.u32 %v324, 2147483648
  %v502 = vxor.u32 %v327, 2147483648
  %v503 = vxor.u32 %v330, 2147483648
  %v504 = vxor.u32 %v333, 2147483648
  %v505 = vxor.u32 %v336, 2147483648
  %v506 = vxor.u32 %v339, 2147483648
  %v507 = vxor.u32 %v342, 2147483648
  %v508 = vxor.u32 %v345, 2147483648
  %v509 = vxor.u32 %v348, 2147483648
  %v510 = vxor.u32 %v351, 2147483648
  %v511 = vxor.u32 %v354, 2147483648
  %v512 = vxor.u32 %v357, 2147483648
  %v513 = vxor.u32 %v360, 2147483648
  %v514 = vxor.u32 %v363, 2147483648
  %v515 = vxor.u32 %v366, 2147483648
  %v516 = vxor.u32 %v369, 2147483648
  %v517 = vxor.u32 %v372, 2147483648
  %v518 = vxor.u32 %v375, 2147483648
  %v519 = vxor.u32 %v378, 2147483648
  %v520 = vxor.u32 %v381, 2147483648
  %v521 = vxor.u32 %v384, 2147483648
  %v522 = vxor.u32 %v387, 2147483648
  %v523 = vxor.u32 %v390, 2147483648
  %v524 = vxor.u32 %v393, 2147483648
  %v525 = vxor.u32 %v396, 2147483648
  %v526 = vxor.u32 %v399, 2147483648
  %v527 = vxor.u32 %v402, 2147483648
  %v528 = vxor.u32 %v405, 2147483648
  %v529 = vxor.u32 %v408, 2147483648
  %v530 = vxor.u32 %v411, 2147483648
  %v531 = vxor.u32 %v414, 2147483648
  %v532 = vxor.u32 %v417, 2147483648
  %v533 = vxor.u32 %v420, 2147483648
  %v534 = vxor.u32 %v423, 2147483648
  %v535 = vxor.u32 %v426, 2147483648
  %v536 = vxor.u32 %v429, 2147483648
  %v537 = vxor.u32 %v432, 2147483648
  %v538 = vxor.u32 %v435, 2147483648
  %v539 = vxor.u32 %v438, 2147483648
  %v540 = vxor.u32 %v441, 2147483648
  %v541 = vxor.u32 %v444, 2147483648
  %v542 = vxor.u32 %v447, 2147483648
  %v543 = vxor.u32 %v450, 2147483648
  %v544 = vxor.u32 %v453, 2147483648
  %v545 = vxor.u32 %v456, 2147483648
  %v546 = vxor.u32 %v459, 2147483648
  %v547 = vxor.u32 %v462, 2147483648
  %v548 = vxor.u32 %v465, 2147483648
  %v549 = vxor.u32 %v468, 2147483648
  %v550 = vxor.u32 %v471, 2147483648
  %v551 = vxor.u32 %v474, 2147483648
  %v552 = vxor.u32 %v477, 2147483648
  %v553 = vxor.u32 %v480, 2147483648
  %v554 = vxor.u32 %v483, 2147483648
  %v555 = vxor.u32 %v486, 2147483648
  %v556 = vxor.u32 %v489, 2147483648
  %v557 = vxor.u32 %v492, 2147483648
  %v558 = vmul.f32 %v494, 1.442695
  %v559 = vpow.pop %v558
  %v560 = vmul.f32 %v495, 1.442695
  %v561 = vpow.pop %v560
  %v562 = vmul.f32 %v496, 1.442695
  %v563 = vpow.pop %v562
  %v564 = vmul.f32 %v497, 1.442695
  %v565 = vpow.pop %v564
  %v566 = vmul.f32 %v498, 1.442695
  %v567 = vpow.pop %v566
  %v568 = vmul.f32 %v499, 1.442695
  %v569 = vpow.pop %v568
  %v570 = vmul.f32 %v500, 1.442695
  %v571 = vpow.pop %v570
  %v572 = vmul.f32 %v501, 1.442695
  %v573 = vpow.pop %v572
  %v574 = vmul.f32 %v502, 1.442695
  %v575 = vpow.pop %v574
  %v576 = vmul.f32 %v503, 1.442695
  %v577 = vpow.pop %v576
  %v578 = vmul.f32 %v504, 1.442695
  %v579 = vpow.pop %v578
  %v580 = vmul.f32 %v505, 1.442695
  %v581 = vpow.pop %v580
  %v582 = vmul.f32 %v506, 1.442695
  %v583 = vpow.pop %v582
  %v584 = vmul.f32 %v507, 1.442695
  %v585 = vpow.pop %v584
  %v586 = vmul.f32 %v508, 1.442695
  %v587 = vpow.pop %v586
  %v588 = vmul.f32 %v509, 1.442695
  %v589 = vpow.pop %v588
  %v590 = vmul.f32 %v510, 1.442695
  %v591 = vpow.pop %v590
  %v592 = vmul.f32 %v511, 1.442695
  %v593 = vpow.pop %v592
  %v594 = vmul.f32 %v512, 1.442695
  %v595 = vpow.pop %v594
  %v596 = vmul.f32 %v513, 1.442695
  %v597 = vpow.pop %v596
  %v598 = vmul.f32 %v514, 1.442695
  %v599 = vpow.pop %v598
  %v600 = vmul.f32 %v515, 1.442695
  %v601 = vpow.pop %v600
  %v602 = vmul.f32 %v516, 1.442695
  %v603 = vpow.pop %v602
  %v604 = vmul.f32 %v517, 1.442695
  %v605 = vpow.pop %v604
  %v606 = vmul.f32 %v518, 1.442695
  %v607 = vpow.pop %v606
  %v608 = vmul.f32 %v519, 1.442695
  %v609 = vpow.pop %v608
  %v610 = vmul.f32 %v520, 1.442695
  %v611 = vpow.pop %v610
  %v612 = vmul.f32 %v521, 1.442695
  %v613 = vpow.pop %v612
  %v614 = vmul.f32 %v522, 1.442695
  %v615 = vpow.pop %v614
  %v616 = vmul.f32 %v523, 1.442695
  %v617 = vpow.pop %v616
  %v618 = vmul.f32 %v524, 1.442695
  %v619 = vpow.pop %v618
  %v620 = vmul.f32 %v525, 1.442695
  %v621 = vpow.pop %v620
  %v622 = vmul.f32 %v526, 1.442695
  %v623 = vpow.pop %v622
  %v624 = vmul.f32 %v527, 1.442695
  %v625 = vpow.pop %v624
  %v626 = vmul.f32 %v528, 1.442695
  %v627 = vpow.pop %v626
  %v628 = vmul.f32 %v529, 1.442695
  %v629 = vpow.pop %v628
  %v630 = vmul.f32 %v530, 1.442695
  %v631 = vpow.pop %v630
  %v632 = vmul.f32 %v531, 1.442695
  %v633 = vpow.pop %v632
  %v634 = vmul.f32 %v532, 1.442695
  %v635 = vpow.pop %v634
  %v636 = vmul.f32 %v533, 1.442695
  %v637 = vpow.pop %v636
  %v638 = vmul.f32 %v534, 1.442695
  %v639 = vpow.pop %v638
  %v640 = vmul.f32 %v535, 1.442695
  %v641 = vpow.pop %v640
  %v642 = vmul.f32 %v536, 1.442695
  %v643 = vpow.pop %v642
  %v644 = vmul.f32 %v537, 1.442695
  %v645 = vpow.pop %v644
  %v646 = vmul.f32 %v538, 1.442695
  %v647 = vpow.pop %v646
  %v648 = vmul.f32 %v539, 1.442695
  %v649 = vpow.pop %v648
  %v650 = vmul.f32 %v540, 1.442695
  %v651 = vpow.pop %v650
  %v652 = vmul.f32 %v541, 1.442695
  %v653 = vpow.pop %v652
  %v654 = vmul.f32 %v542, 1.442695
  %v655 = vpow.pop %v654
  %v656 = vmul.f32 %v543, 1.442695
  %v657 = vpow.pop %v656
  %v658 = vmul.f32 %v544, 1.442695
  %v659 = vpow.pop %v658
  %v660 = vmul.f32 %v545, 1.442695
  %v661 = vpow.pop %v660
  %v662 = vmul.f32 %v546, 1.442695
  %v663 = vpow.pop %v662
  %v664 = vmul.f32 %v547, 1.442695
  %v665 = vpow.pop %v664
  %v666 = vmul.f32 %v548, 1.442695
  %v667 = vpow.pop %v666
  %v668 = vmul.f32 %v549, 1.442695
  %v669 = vpow.pop %v668
  %v670 = vmul.f32 %v550, 1.442695
  %v671 = vpow.pop %v670
  %v672 = vmul.f32 %v551, 1.442695
  %v673 = vpow.pop %v672
  %v674 = vmul.f32 %v552, 1.442695
  %v675 = vpow.pop %v674
  %v676 = vmul.f32 %v553, 1.442695
  %v677 = vpow.pop %v676
  %v678 = vmul.f32 %v554, 1.442695
  %v679 = vpow.pop %v678
  %v680 = vmul.f32 %v555, 1.442695
  %v681 = vpow.pop %v680
  %v682 = vmul.f32 %v556, 1.442695
  %v683 = vpow.pop %v682
  %v684 = vmul.f32 %v557, 1.442695
  %v685 = vpow.pop %v684
  %v686 = vadd.f32 %v559, 1.0
  %v687 = vadd.f32 %v561, 1.0
  %v688 = vadd.f32 %v563, 1.0
  %v689 = vadd.f32 %v565, 1.0
  %v690 = vadd.f32 %v567, 1.0
  %v691 = vadd.f32 %v569, 1.0
  %v692 = vadd.f32 %v571, 1.0
  %v693 = vadd.f32 %v573, 1.0
  %v694 = vadd.f32 %v575, 1.0
  %v695 = vadd.f32 %v577, 1.0
  %v696 = vadd.f32 %v579, 1.0
  %v697 = vadd.f32 %v581, 1.0
  %v698 = vadd.f32 %v583, 1.0
  %v699 = vadd.f32 %v585, 1.0
  %v700 = vadd.f32 %v587, 1.0
  %v701 = vadd.f32 %v589, 1.0
  %v702 = vadd.f32 %v591, 1.0
  %v703 = vadd.f32 %v593, 1.0
  %v704 = vadd.f32 %v595, 1.0
  %v705 = vadd.f32 %v597, 1.0
  %v706 = vadd.f32 %v599, 1.0
  %v707 = vadd.f32 %v601, 1.0
  %v708 = vadd.f32 %v603, 1.0
  %v709 = vadd.f32 %v605, 1.0
  %v710 = vadd.f32 %v607, 1.0
  %v711 = vadd.f32 %v609, 1.0
  %v712 = vadd.f32 %v611, 1.0
  %v713 = vadd.f32 %v613, 1.0
  %v714 = vadd.f32 %v615, 1.0
  %v715 = vadd.f32 %v617, 1.0
  %v716 = vadd.f32 %v619, 1.0
  %v717 = vadd.f32 %v621, 1.0
  %v718 = vadd.f32 %v623, 1.0
  %v719 = vadd.f32 %v625, 1.0
  %v720 = vadd.f32 %v627, 1.0
  %v721 = vadd.f32 %v629, 1.0
  %v722 = vadd.f32 %v631, 1.0
  %v723 = vadd.f32 %v633, 1.0
  %v724 = vadd.f32 %v635, 1.0
  %v725 = vadd.f32 %v637, 1.0
  %v726 = vadd.f32 %v639, 1.0
  %v727 = vadd.f32 %v641, 1.0
  %v728 = vadd.f32 %v643, 1.0
  %v729 = vadd.f32 %v645, 1.0
  %v730 = vadd.f32 %v647, 1.0
  %v731 = vadd.f32 %v649, 1.0
  %v732 = vadd.f32 %v651, 1.0
  %v733 = vadd.f32 %v653, 1.0
  %v734 = vadd.f32 %v655, 1.0
  %v735 = vadd.f32 %v657, 1.0
  %v736 = vadd.f32 %v659, 1.0
  %v737 = vadd.f32 %v661, 1.0
  %v738 = vadd.f32 %v663, 1.0
  %v739 = vadd.f32 %v665, 1.0
  %v740 = vadd.f32 %v667, 1.0
  %v741 = vadd.f32 %v669, 1.0
  %v742 = vadd.f32 %v671, 1.0
  %v743 = vadd.f32 %v673, 1.0
  %v744 = vadd.f32 %v675, 1.0
  %v745 = vadd.f32 %v677, 1.0
  %v746 = vadd.f32 %v679, 1.0
  %v747 = vadd.f32 %v681, 1.0
  %v748 = vadd.f32 %v683, 1.0
  %v749 = vadd.f32 %v685, 1.0
  %v750 = vrcp.pop %v686
  %v751 = vmul.f32 %v686, %v750
  %v752 = vsub.f32 1.0, %v751
  %v753 = vmul.f32 %v750, %v752
  %v754 = vadd.f32 %v750, %v753
  %vm755 = vweird.f32 %v686
  %vm756 = vweird.f32 %v750
  %vm757 = vmor %vm755, %vm756
  %v758 = vsel %vm757, %v750, %v754
  %v759 = vand.u32 2147483647, %v686
  %vm760 = vcmp.eq.f32.partialorder %v759, 8.507059e+37
  %v761 = vand.u32 %v686, 2147483648
  %v762 = vor.u32 1.1754944e-38, %v761
  %v763 = vsel %vm760, %v762, %v758
  %v764 = vmul.f32 1.0, %v763
  %v765 = vrcp.pop %v687
  %v766 = vmul.f32 %v687, %v765
  %v767 = vsub.f32 1.0, %v766
  %v768 = vmul.f32 %v765, %v767
  %v769 = vadd.f32 %v765, %v768
  %vm770 = vweird.f32 %v687
  %vm771 = vweird.f32 %v765
  %vm772 = vmor %vm770, %vm771
  %v773 = vsel %vm772, %v765, %v769
  %v774 = vand.u32 2147483647, %v687
  %vm775 = vcmp.eq.f32.partialorder %v774, 8.507059e+37
  %v776 = vand.u32 %v687, 2147483648
  %v777 = vor.u32 1.1754944e-38, %v776
  %v778 = vsel %vm775, %v777, %v773
  %v779 = vmul.f32 1.0, %v778
  %v780 = vrcp.pop %v688
  %v781 = vmul.f32 %v688, %v780
  %v782 = vsub.f32 1.0, %v781
  %v783 = vmul.f32 %v780, %v782
  %v784 = vadd.f32 %v780, %v783
  %vm785 = vweird.f32 %v688
  %vm786 = vweird.f32 %v780
  %vm787 = vmor %vm785, %vm786
  %v788 = vsel %vm787, %v780, %v784
  %v789 = vand.u32 2147483647, %v688
  %vm790 = vcmp.eq.f32.partialorder %v789, 8.507059e+37
  %v791 = vand.u32 %v688, 2147483648
  %v792 = vor.u32 1.1754944e-38, %v791
  %v793 = vsel %vm790, %v792, %v788
  %v794 = vmul.f32 1.0, %v793
  %v795 = vrcp.pop %v689
  %v796 = vmul.f32 %v689, %v795
  %v797 = vsub.f32 1.0, %v796
  %v798 = vmul.f32 %v795, %v797
  %v799 = vadd.f32 %v795, %v798
  %vm800 = vweird.f32 %v689
  %vm801 = vweird.f32 %v795
  %vm802 = vmor %vm800, %vm801
  %v803 = vsel %vm802, %v795, %v799
  %v804 = vand.u32 2147483647, %v689
  %vm805 = vcmp.eq.f32.partialorder %v804, 8.507059e+37
  %v806 = vand.u32 %v689, 2147483648
  %v807 = vor.u32 1.1754944e-38, %v806
  %v808 = vsel %vm805, %v807, %v803
  %v809 = vmul.f32 1.0, %v808
  %v810 = vrcp.pop %v690
  %v811 = vmul.f32 %v690, %v810
  %v812 = vsub.f32 1.0, %v811
  %v813 = vmul.f32 %v810, %v812
  %v814 = vadd.f32 %v810, %v813
  %vm815 = vweird.f32 %v690
  %vm816 = vweird.f32 %v810
  %vm817 = vmor %vm815, %vm816
  %v818 = vsel %vm817, %v810, %v814
  %v819 = vand.u32 2147483647, %v690
  %vm820 = vcmp.eq.f32.partialorder %v819, 8.507059e+37
  %v821 = vand.u32 %v690, 2147483648
  %v822 = vor.u32 1.1754944e-38, %v821
  %v823 = vsel %vm820, %v822, %v818
  %v824 = vmul.f32 1.0, %v823
  %v825 = vrcp.pop %v691
  %v826 = vmul.f32 %v691, %v825
  %v827 = vsub.f32 1.0, %v826
  %v828 = vmul.f32 %v825, %v827
  %v829 = vadd.f32 %v825, %v828
  %vm830 = vweird.f32 %v691
  %vm831 = vweird.f32 %v825
  %vm832 = vmor %vm830, %vm831
  %v833 = vsel %vm832, %v825, %v829
  %v834 = vand.u32 2147483647, %v691
  %vm835 = vcmp.eq.f32.partialorder %v834, 8.507059e+37
  %v836 = vand.u32 %v691, 2147483648
  %v837 = vor.u32 1.1754944e-38, %v836
  %v838 = vsel %vm835, %v837, %v833
  %v839 = vmul.f32 1.0, %v838
  %v840 = vrcp.pop %v692
  %v841 = vmul.f32 %v692, %v840
  %v842 = vsub.f32 1.0, %v841
  %v843 = vmul.f32 %v840, %v842
  %v844 = vadd.f32 %v840, %v843
  %vm845 = vweird.f32 %v692
  %vm846 = vweird.f32 %v840
  %vm847 = vmor %vm845, %vm846
  %v848 = vsel %vm847, %v840, %v844
  %v849 = vand.u32 2147483647, %v692
  %vm850 = vcmp.eq.f32.partialorder %v849, 8.507059e+37
  %v851 = vand.u32 %v692, 2147483648
  %v852 = vor.u32 1.1754944e-38, %v851
  %v853 = vsel %vm850, %v852, %v848
  %v854 = vmul.f32 1.0, %v853
  %v855 = vrcp.pop %v693
  %v856 = vmul.f32 %v693, %v855
  %v857 = vsub.f32 1.0, %v856
  %v858 = vmul.f32 %v855, %v857
  %v859 = vadd.f32 %v855, %v858
  %vm860 = vweird.f32 %v693
  %vm861 = vweird.f32 %v855
  %vm862 = vmor %vm860, %vm861
  %v863 = vsel %vm862, %v855, %v859
  %v864 = vand.u32 2147483647, %v693
  %vm865 = vcmp.eq.f32.partialorder %v864, 8.507059e+37
  %v866 = vand.u32 %v693, 2147483648
  %v867 = vor.u32 1.1754944e-38, %v866
  %v868 = vsel %vm865, %v867, %v863
  %v869 = vmul.f32 1.0, %v868
  %v870 = vrcp.pop %v694
  %v871 = vmul.f32 %v694, %v870
  %v872 = vsub.f32 1.0, %v871
  %v873 = vmul.f32 %v870, %v872
  %v874 = vadd.f32 %v870, %v873
  %vm875 = vweird.f32 %v694
  %vm876 = vweird.f32 %v870
  %vm877 = vmor %vm875, %vm876
  %v878 = vsel %vm877, %v870, %v874
  %v879 = vand.u32 2147483647, %v694
  %vm880 = vcmp.eq.f32.partialorder %v879, 8.507059e+37
  %v881 = vand.u32 %v694, 2147483648
  %v882 = vor.u32 1.1754944e-38, %v881
  %v883 = vsel %vm880, %v882, %v878
  %v884 = vmul.f32 1.0, %v883
  %v885 = vrcp.pop %v695
  %v886 = vmul.f32 %v695, %v885
  %v887 = vsub.f32 1.0, %v886
  %v888 = vmul.f32 %v885, %v887
  %v889 = vadd.f32 %v885, %v888
  %vm890 = vweird.f32 %v695
  %vm891 = vweird.f32 %v885
  %vm892 = vmor %vm890, %vm891
  %v893 = vsel %vm892, %v885, %v889
  %v894 = vand.u32 2147483647, %v695
  %vm895 = vcmp.eq.f32.partialorder %v894, 8.507059e+37
  %v896 = vand.u32 %v695, 2147483648
  %v897 = vor.u32 1.1754944e-38, %v896
  %v898 = vsel %vm895, %v897, %v893
  %v899 = vmul.f32 1.0, %v898
  %v900 = vrcp.pop %v696
  %v901 = vmul.f32 %v696, %v900
  %v902 = vsub.f32 1.0, %v901
  %v903 = vmul.f32 %v900, %v902
  %v904 = vadd.f32 %v900, %v903
  %vm905 = vweird.f32 %v696
  %vm906 = vweird.f32 %v900
  %vm907 = vmor %vm905, %vm906
  %v908 = vsel %vm907, %v900, %v904
  %v909 = vand.u32 2147483647, %v696
  %vm910 = vcmp.eq.f32.partialorder %v909, 8.507059e+37
  %v911 = vand.u32 %v696, 2147483648
  %v912 = vor.u32 1.1754944e-38, %v911
  %v913 = vsel %vm910, %v912, %v908
  %v914 = vmul.f32 1.0, %v913
  %v915 = vrcp.pop %v697
  %v916 = vmul.f32 %v697, %v915
  %v917 = vsub.f32 1.0, %v916
  %v918 = vmul.f32 %v915, %v917
  %v919 = vadd.f32 %v915, %v918
  %vm920 = vweird.f32 %v697
  %vm921 = vweird.f32 %v915
  %vm922 = vmor %vm920, %vm921
  %v923 = vsel %vm922, %v915, %v919
  %v924 = vand.u32 2147483647, %v697
  %vm925 = vcmp.eq.f32.partialorder %v924, 8.507059e+37
  %v926 = vand.u32 %v697, 2147483648
  %v927 = vor.u32 1.1754944e-38, %v926
  %v928 = vsel %vm925, %v927, %v923
  %v929 = vmul.f32 1.0, %v928
  %v930 = vrcp.pop %v698
  %v931 = vmul.f32 %v698, %v930
  %v932 = vsub.f32 1.0, %v931
  %v933 = vmul.f32 %v930, %v932
  %v934 = vadd.f32 %v930, %v933
  %vm935 = vweird.f32 %v698
  %vm936 = vweird.f32 %v930
  %vm937 = vmor %vm935, %vm936
  %v938 = vsel %vm937, %v930, %v934
  %v939 = vand.u32 2147483647, %v698
  %vm940 = vcmp.eq.f32.partialorder %v939, 8.507059e+37
  %v941 = vand.u32 %v698, 2147483648
  %v942 = vor.u32 1.1754944e-38, %v941
  %v943 = vsel %vm940, %v942, %v938
  %v944 = vmul.f32 1.0, %v943
  %v945 = vrcp.pop %v699
  %v946 = vmul.f32 %v699, %v945
  %v947 = vsub.f32 1.0, %v946
  %v948 = vmul.f32 %v945, %v947
  %v949 = vadd.f32 %v945, %v948
  %vm950 = vweird.f32 %v699
  %vm951 = vweird.f32 %v945
  %vm952 = vmor %vm950, %vm951
  %v953 = vsel %vm952, %v945, %v949
  %v954 = vand.u32 2147483647, %v699
  %vm955 = vcmp.eq.f32.partialorder %v954, 8.507059e+37
  %v956 = vand.u32 %v699, 2147483648
  %v957 = vor.u32 1.1754944e-38, %v956
  %v958 = vsel %vm955, %v957, %v953
  %v959 = vmul.f32 1.0, %v958
  %v960 = vrcp.pop %v700
  %v961 = vmul.f32 %v700, %v960
  %v962 = vsub.f32 1.0, %v961
  %v963 = vmul.f32 %v960, %v962
  %v964 = vadd.f32 %v960, %v963
  %vm965 = vweird.f32 %v700
  %vm966 = vweird.f32 %v960
  %vm967 = vmor %vm965, %vm966
  %v968 = vsel %vm967, %v960, %v964
  %v969 = vand.u32 2147483647, %v700
  %vm970 = vcmp.eq.f32.partialorder %v969, 8.507059e+37
  %v971 = vand.u32 %v700, 2147483648
  %v972 = vor.u32 1.1754944e-38, %v971
  %v973 = vsel %vm970, %v972, %v968
  %v974 = vmul.f32 1.0, %v973
  %v975 = vrcp.pop %v701
  %v976 = vmul.f32 %v701, %v975
  %v977 = vsub.f32 1.0, %v976
  %v978 = vmul.f32 %v975, %v977
  %v979 = vadd.f32 %v975, %v978
  %vm980 = vweird.f32 %v701
  %vm981 = vweird.f32 %v975
  %vm982 = vmor %vm980, %vm981
  %v983 = vsel %vm982, %v975, %v979
  %v984 = vand.u32 2147483647, %v701
  %vm985 = vcmp.eq.f32.partialorder %v984, 8.507059e+37
  %v986 = vand.u32 %v701, 2147483648
  %v987 = vor.u32 1.1754944e-38, %v986
  %v988 = vsel %vm985, %v987, %v983
  %v989 = vmul.f32 1.0, %v988
  %v990 = vrcp.pop %v702
  %v991 = vmul.f32 %v702, %v990
  %v992 = vsub.f32 1.0, %v991
  %v993 = vmul.f32 %v990, %v992
  %v994 = vadd.f32 %v990, %v993
  %vm995 = vweird.f32 %v702
  %vm996 = vweird.f32 %v990
  %vm997 = vmor %vm995, %vm996
  %v998 = vsel %vm997, %v990, %v994
  %v999 = vand.u32 2147483647, %v702
  %vm1000 = vcmp.eq.f32.partialorder %v999, 8.507059e+37
  %v1001 = vand.u32 %v702, 2147483648
  %v1002 = vor.u32 1.1754944e-38, %v1001
  %v1003 = vsel %vm1000, %v1002, %v998
  %v1004 = vmul.f32 1.0, %v1003
  %v1005 = vrcp.pop %v703
  %v1006 = vmul.f32 %v703, %v1005
  %v1007 = vsub.f32 1.0, %v1006
  %v1008 = vmul.f32 %v1005, %v1007
  %v1009 = vadd.f32 %v1005, %v1008
  %vm1010 = vweird.f32 %v703
  %vm1011 = vweird.f32 %v1005
  %vm1012 = vmor %vm1010, %vm1011
  %v1013 = vsel %vm1012, %v1005, %v1009
  %v1014 = vand.u32 2147483647, %v703
  %vm1015 = vcmp.eq.f32.partialorder %v1014, 8.507059e+37
  %v1016 = vand.u32 %v703, 2147483648
  %v1017 = vor.u32 1.1754944e-38, %v1016
  %v1018 = vsel %vm1015, %v1017, %v1013
  %v1019 = vmul.f32 1.0, %v1018
  %v1020 = vrcp.pop %v704
  %v1021 = vmul.f32 %v704, %v1020
  %v1022 = vsub.f32 1.0, %v1021
  %v1023 = vmul.f32 %v1020, %v1022
  %v1024 = vadd.f32 %v1020, %v1023
  %vm1025 = vweird.f32 %v704
  %vm1026 = vweird.f32 %v1020
  %vm1027 = vmor %vm1025, %vm1026
  %v1028 = vsel %vm1027, %v1020, %v1024
  %v1029 = vand.u32 2147483647, %v704
  %vm1030 = vcmp.eq.f32.partialorder %v1029, 8.507059e+37
  %v1031 = vand.u32 %v704, 2147483648
  %v1032 = vor.u32 1.1754944e-38, %v1031
  %v1033 = vsel %vm1030, %v1032, %v1028
  %v1034 = vmul.f32 1.0, %v1033
  %v1035 = vrcp.pop %v705
  %v1036 = vmul.f32 %v705, %v1035
  %v1037 = vsub.f32 1.0, %v1036
  %v1038 = vmul.f32 %v1035, %v1037
  %v1039 = vadd.f32 %v1035, %v1038
  %vm1040 = vweird.f32 %v705
  %vm1041 = vweird.f32 %v1035
  %vm1042 = vmor %vm1040, %vm1041
  %v1043 = vsel %vm1042, %v1035, %v1039
  %v1044 = vand.u32 2147483647, %v705
  %vm1045 = vcmp.eq.f32.partialorder %v1044, 8.507059e+37
  %v1046 = vand.u32 %v705, 2147483648
  %v1047 = vor.u32 1.1754944e-38, %v1046
  %v1048 = vsel %vm1045, %v1047, %v1043
  %v1049 = vmul.f32 1.0, %v1048
  %v1050 = vrcp.pop %v706
  %v1051 = vmul.f32 %v706, %v1050
  %v1052 = vsub.f32 1.0, %v1051
  %v1053 = vmul.f32 %v1050, %v1052
  %v1054 = vadd.f32 %v1050, %v1053
  %vm1055 = vweird.f32 %v706
  %vm1056 = vweird.f32 %v1050
  %vm1057 = vmor %vm1055, %vm1056
  %v1058 = vsel %vm1057, %v1050, %v1054
  %v1059 = vand.u32 2147483647, %v706
  %vm1060 = vcmp.eq.f32.partialorder %v1059, 8.507059e+37
  %v1061 = vand.u32 %v706, 2147483648
  %v1062 = vor.u32 1.1754944e-38, %v1061
  %v1063 = vsel %vm1060, %v1062, %v1058
  %v1064 = vmul.f32 1.0, %v1063
  %v1065 = vrcp.pop %v707
  %v1066 = vmul.f32 %v707, %v1065
  %v1067 = vsub.f32 1.0, %v1066
  %v1068 = vmul.f32 %v1065, %v1067
  %v1069 = vadd.f32 %v1065, %v1068
  %vm1070 = vweird.f32 %v707
  %vm1071 = vweird.f32 %v1065
  %vm1072 = vmor %vm1070, %vm1071
  %v1073 = vsel %vm1072, %v1065, %v1069
  %v1074 = vand.u32 2147483647, %v707
  %vm1075 = vcmp.eq.f32.partialorder %v1074, 8.507059e+37
  %v1076 = vand.u32 %v707, 2147483648
  %v1077 = vor.u32 1.1754944e-38, %v1076
  %v1078 = vsel %vm1075, %v1077, %v1073
  %v1079 = vmul.f32 1.0, %v1078
  %v1080 = vrcp.pop %v708
  %v1081 = vmul.f32 %v708, %v1080
  %v1082 = vsub.f32 1.0, %v1081
  %v1083 = vmul.f32 %v1080, %v1082
  %v1084 = vadd.f32 %v1080, %v1083
  %vm1085 = vweird.f32 %v708
  %vm1086 = vweird.f32 %v1080
  %vm1087 = vmor %vm1085, %vm1086
  %v1088 = vsel %vm1087, %v1080, %v1084
  %v1089 = vand.u32 2147483647, %v708
  %vm1090 = vcmp.eq.f32.partialorder %v1089, 8.507059e+37
  %v1091 = vand.u32 %v708, 2147483648
  %v1092 = vor.u32 1.1754944e-38, %v1091
  %v1093 = vsel %vm1090, %v1092, %v1088
  %v1094 = vmul.f32 1.0, %v1093
  %v1095 = vrcp.pop %v709
  %v1096 = vmul.f32 %v709, %v1095
  %v1097 = vsub.f32 1.0, %v1096
  %v1098 = vmul.f32 %v1095, %v1097
  %v1099 = vadd.f32 %v1095, %v1098
  %vm1100 = vweird.f32 %v709
  %vm1101 = vweird.f32 %v1095
  %vm1102 = vmor %vm1100, %vm1101
  %v1103 = vsel %vm1102, %v1095, %v1099
  %v1104 = vand.u32 2147483647, %v709
  %vm1105 = vcmp.eq.f32.partialorder %v1104, 8.507059e+37
  %v1106 = vand.u32 %v709, 2147483648
  %v1107 = vor.u32 1.1754944e-38, %v1106
  %v1108 = vsel %vm1105, %v1107, %v1103
  %v1109 = vmul.f32 1.0, %v1108
  %v1110 = vrcp.pop %v710
  %v1111 = vmul.f32 %v710, %v1110
  %v1112 = vsub.f32 1.0, %v1111
  %v1113 = vmul.f32 %v1110, %v1112
  %v1114 = vadd.f32 %v1110, %v1113
  %vm1115 = vweird.f32 %v710
  %vm1116 = vweird.f32 %v1110
  %vm1117 = vmor %vm1115, %vm1116
  %v1118 = vsel %vm1117, %v1110, %v1114
  %v1119 = vand.u32 2147483647, %v710
  %vm1120 = vcmp.eq.f32.partialorder %v1119, 8.507059e+37
  %v1121 = vand.u32 %v710, 2147483648
  %v1122 = vor.u32 1.1754944e-38, %v1121
  %v1123 = vsel %vm1120, %v1122, %v1118
  %v1124 = vmul.f32 1.0, %v1123
  %v1125 = vrcp.pop %v711
  %v1126 = vmul.f32 %v711, %v1125
  %v1127 = vsub.f32 1.0, %v1126
  %v1128 = vmul.f32 %v1125, %v1127
  %v1129 = vadd.f32 %v1125, %v1128
  %vm1130 = vweird.f32 %v711
  %vm1131 = vweird.f32 %v1125
  %vm1132 = vmor %vm1130, %vm1131
  %v1133 = vsel %vm1132, %v1125, %v1129
  %v1134 = vand.u32 2147483647, %v711
  %vm1135 = vcmp.eq.f32.partialorder %v1134, 8.507059e+37
  %v1136 = vand.u32 %v711, 2147483648
  %v1137 = vor.u32 1.1754944e-38, %v1136
  %v1138 = vsel %vm1135, %v1137, %v1133
  %v1139 = vmul.f32 1.0, %v1138
  %v1140 = vrcp.pop %v712
  %v1141 = vmul.f32 %v712, %v1140
  %v1142 = vsub.f32 1.0, %v1141
  %v1143 = vmul.f32 %v1140, %v1142
  %v1144 = vadd.f32 %v1140, %v1143
  %vm1145 = vweird.f32 %v712
  %vm1146 = vweird.f32 %v1140
  %vm1147 = vmor %vm1145, %vm1146
  %v1148 = vsel %vm1147, %v1140, %v1144
  %v1149 = vand.u32 2147483647, %v712
  %vm1150 = vcmp.eq.f32.partialorder %v1149, 8.507059e+37
  %v1151 = vand.u32 %v712, 2147483648
  %v1152 = vor.u32 1.1754944e-38, %v1151
  %v1153 = vsel %vm1150, %v1152, %v1148
  %v1154 = vmul.f32 1.0, %v1153
  %v1155 = vrcp.pop %v713
  %v1156 = vmul.f32 %v713, %v1155
  %v1157 = vsub.f32 1.0, %v1156
  %v1158 = vmul.f32 %v1155, %v1157
  %v1159 = vadd.f32 %v1155, %v1158
  %vm1160 = vweird.f32 %v713
  %vm1161 = vweird.f32 %v1155
  %vm1162 = vmor %vm1160, %vm1161
  %v1163 = vsel %vm1162, %v1155, %v1159
  %v1164 = vand.u32 2147483647, %v713
  %vm1165 = vcmp.eq.f32.partialorder %v1164, 8.507059e+37
  %v1166 = vand.u32 %v713, 2147483648
  %v1167 = vor.u32 1.1754944e-38, %v1166
  %v1168 = vsel %vm1165, %v1167, %v1163
  %v1169 = vmul.f32 1.0, %v1168
  %v1170 = vrcp.pop %v714
  %v1171 = vmul.f32 %v714, %v1170
  %v1172 = vsub.f32 1.0, %v1171
  %v1173 = vmul.f32 %v1170, %v1172
  %v1174 = vadd.f32 %v1170, %v1173
  %vm1175 = vweird.f32 %v714
  %vm1176 = vweird.f32 %v1170
  %vm1177 = vmor %vm1175, %vm1176
  %v1178 = vsel %vm1177, %v1170, %v1174
  %v1179 = vand.u32 2147483647, %v714
  %vm1180 = vcmp.eq.f32.partialorder %v1179, 8.507059e+37
  %v1181 = vand.u32 %v714, 2147483648
  %v1182 = vor.u32 1.1754944e-38, %v1181
  %v1183 = vsel %vm1180, %v1182, %v1178
  %v1184 = vmul.f32 1.0, %v1183
  %v1185 = vrcp.pop %v715
  %v1186 = vmul.f32 %v715, %v1185
  %v1187 = vsub.f32 1.0, %v1186
  %v1188 = vmul.f32 %v1185, %v1187
  %v1189 = vadd.f32 %v1185, %v1188
  %vm1190 = vweird.f32 %v715
  %vm1191 = vweird.f32 %v1185
  %vm1192 = vmor %vm1190, %vm1191
  %v1193 = vsel %vm1192, %v1185, %v1189
  %v1194 = vand.u32 2147483647, %v715
  %vm1195 = vcmp.eq.f32.partialorder %v1194, 8.507059e+37
  %v1196 = vand.u32 %v715, 2147483648
  %v1197 = vor.u32 1.1754944e-38, %v1196
  %v1198 = vsel %vm1195, %v1197, %v1193
  %v1199 = vmul.f32 1.0, %v1198
  %v1200 = vrcp.pop %v716
  %v1201 = vmul.f32 %v716, %v1200
  %v1202 = vsub.f32 1.0, %v1201
  %v1203 = vmul.f32 %v1200, %v1202
  %v1204 = vadd.f32 %v1200, %v1203
  %vm1205 = vweird.f32 %v716
  %vm1206 = vweird.f32 %v1200
  %vm1207 = vmor %vm1205, %vm1206
  %v1208 = vsel %vm1207, %v1200, %v1204
  %v1209 = vand.u32 2147483647, %v716
  %vm1210 = vcmp.eq.f32.partialorder %v1209, 8.507059e+37
  %v1211 = vand.u32 %v716, 2147483648
  %v1212 = vor.u32 1.1754944e-38, %v1211
  %v1213 = vsel %vm1210, %v1212, %v1208
  %v1214 = vmul.f32 1.0, %v1213
  %v1215 = vrcp.pop %v717
  %v1216 = vmul.f32 %v717, %v1215
  %v1217 = vsub.f32 1.0, %v1216
  %v1218 = vmul.f32 %v1215, %v1217
  %v1219 = vadd.f32 %v1215, %v1218
  %vm1220 = vweird.f32 %v717
  %vm1221 = vweird.f32 %v1215
  %vm1222 = vmor %vm1220, %vm1221
  %v1223 = vsel %vm1222, %v1215, %v1219
  %v1224 = vand.u32 2147483647, %v717
  %vm1225 = vcmp.eq.f32.partialorder %v1224, 8.507059e+37
  %v1226 = vand.u32 %v717, 2147483648
  %v1227 = vor.u32 1.1754944e-38, %v1226
  %v1228 = vsel %vm1225, %v1227, %v1223
  %v1229 = vmul.f32 1.0, %v1228
  %v1230 = vrcp.pop %v718
  %v1231 = vmul.f32 %v718, %v1230
  %v1232 = vsub.f32 1.0, %v1231
  %v1233 = vmul.f32 %v1230, %v1232
  %v1234 = vadd.f32 %v1230, %v1233
  %vm1235 = vweird.f32 %v718
  %vm1236 = vweird.f32 %v1230
  %vm1237 = vmor %vm1235, %vm1236
  %v1238 = vsel %vm1237, %v1230, %v1234
  %v1239 = vand.u32 2147483647, %v718
  %vm1240 = vcmp.eq.f32.partialorder %v1239, 8.507059e+37
  %v1241 = vand.u32 %v718, 2147483648
  %v1242 = vor.u32 1.1754944e-38, %v1241
  %v1243 = vsel %vm1240, %v1242, %v1238
  %v1244 = vmul.f32 1.0, %v1243
  %v1245 = vrcp.pop %v719
  %v1246 = vmul.f32 %v719, %v1245
  %v1247 = vsub.f32 1.0, %v1246
  %v1248 = vmul.f32 %v1245, %v1247
  %v1249 = vadd.f32 %v1245, %v1248
  %vm1250 = vweird.f32 %v719
  %vm1251 = vweird.f32 %v1245
  %vm1252 = vmor %vm1250, %vm1251
  %v1253 = vsel %vm1252, %v1245, %v1249
  %v1254 = vand.u32 2147483647, %v719
  %vm1255 = vcmp.eq.f32.partialorder %v1254, 8.507059e+37
  %v1256 = vand.u32 %v719, 2147483648
  %v1257 = vor.u32 1.1754944e-38, %v1256
  %v1258 = vsel %vm1255, %v1257, %v1253
  %v1259 = vmul.f32 1.0, %v1258
  %v1260 = vrcp.pop %v720
  %v1261 = vmul.f32 %v720, %v1260
  %v1262 = vsub.f32 1.0, %v1261
  %v1263 = vmul.f32 %v1260, %v1262
  %v1264 = vadd.f32 %v1260, %v1263
  %vm1265 = vweird.f32 %v720
  %vm1266 = vweird.f32 %v1260
  %vm1267 = vmor %vm1265, %vm1266
  %v1268 = vsel %vm1267, %v1260, %v1264
  %v1269 = vand.u32 2147483647, %v720
  %vm1270 = vcmp.eq.f32.partialorder %v1269, 8.507059e+37
  %v1271 = vand.u32 %v720, 2147483648
  %v1272 = vor.u32 1.1754944e-38, %v1271
  %v1273 = vsel %vm1270, %v1272, %v1268
  %v1274 = vmul.f32 1.0, %v1273
  %v1275 = vrcp.pop %v721
  %v1276 = vmul.f32 %v721, %v1275
  %v1277 = vsub.f32 1.0, %v1276
  %v1278 = vmul.f32 %v1275, %v1277
  %v1279 = vadd.f32 %v1275, %v1278
  %vm1280 = vweird.f32 %v721
  %vm1281 = vweird.f32 %v1275
  %vm1282 = vmor %vm1280, %vm1281
  %v1283 = vsel %vm1282, %v1275, %v1279
  %v1284 = vand.u32 2147483647, %v721
  %vm1285 = vcmp.eq.f32.partialorder %v1284, 8.507059e+37
  %v1286 = vand.u32 %v721, 2147483648
  %v1287 = vor.u32 1.1754944e-38, %v1286
  %v1288 = vsel %vm1285, %v1287, %v1283
  %v1289 = vmul.f32 1.0, %v1288
  %v1290 = vrcp.pop %v722
  %v1291 = vmul.f32 %v722, %v1290
  %v1292 = vsub.f32 1.0, %v1291
  %v1293 = vmul.f32 %v1290, %v1292
  %v1294 = vadd.f32 %v1290, %v1293
  %vm1295 = vweird.f32 %v722
  %vm1296 = vweird.f32 %v1290
  %vm1297 = vmor %vm1295, %vm1296
  %v1298 = vsel %vm1297, %v1290, %v1294
  %v1299 = vand.u32 2147483647, %v722
  %vm1300 = vcmp.eq.f32.partialorder %v1299, 8.507059e+37
  %v1301 = vand.u32 %v722, 2147483648
  %v1302 = vor.u32 1.1754944e-38, %v1301
  %v1303 = vsel %vm1300, %v1302, %v1298
  %v1304 = vmul.f32 1.0, %v1303
  %v1305 = vrcp.pop %v723
  %v1306 = vmul.f32 %v723, %v1305
  %v1307 = vsub.f32 1.0, %v1306
  %v1308 = vmul.f32 %v1305, %v1307
  %v1309 = vadd.f32 %v1305, %v1308
  %vm1310 = vweird.f32 %v723
  %vm1311 = vweird.f32 %v1305
  %vm1312 = vmor %vm1310, %vm1311
  %v1313 = vsel %vm1312, %v1305, %v1309
  %v1314 = vand.u32 2147483647, %v723
  %vm1315 = vcmp.eq.f32.partialorder %v1314, 8.507059e+37
  %v1316 = vand.u32 %v723, 2147483648
  %v1317 = vor.u32 1.1754944e-38, %v1316
  %v1318 = vsel %vm1315, %v1317, %v1313
  %v1319 = vmul.f32 1.0, %v1318
  %v1320 = vrcp.pop %v724
  %v1321 = vmul.f32 %v724, %v1320
  %v1322 = vsub.f32 1.0, %v1321
  %v1323 = vmul.f32 %v1320, %v1322
  %v1324 = vadd.f32 %v1320, %v1323
  %vm1325 = vweird.f32 %v724
  %vm1326 = vweird.f32 %v1320
  %vm1327 = vmor %vm1325, %vm1326
  %v1328 = vsel %vm1327, %v1320, %v1324
  %v1329 = vand.u32 2147483647, %v724
  %vm1330 = vcmp.eq.f32.partialorder %v1329, 8.507059e+37
  %v1331 = vand.u32 %v724, 2147483648
  %v1332 = vor.u32 1.1754944e-38, %v1331
  %v1333 = vsel %vm1330, %v1332, %v1328
  %v1334 = vmul.f32 1.0, %v1333
  %v1335 = vrcp.pop %v725
  %v1336 = vmul.f32 %v725, %v1335
  %v1337 = vsub.f32 1.0, %v1336
  %v1338 = vmul.f32 %v1335, %v1337
  %v1339 = vadd.f32 %v1335, %v1338
  %vm1340 = vweird.f32 %v725
  %vm1341 = vweird.f32 %v1335
  %vm1342 = vmor %vm1340, %vm1341
  %v1343 = vsel %vm1342, %v1335, %v1339
  %v1344 = vand.u32 2147483647, %v725
  %vm1345 = vcmp.eq.f32.partialorder %v1344, 8.507059e+37
  %v1346 = vand.u32 %v725, 2147483648
  %v1347 = vor.u32 1.1754944e-38, %v1346
  %v1348 = vsel %vm1345, %v1347, %v1343
  %v1349 = vmul.f32 1.0, %v1348
  %v1350 = vrcp.pop %v726
  %v1351 = vmul.f32 %v726, %v1350
  %v1352 = vsub.f32 1.0, %v1351
  %v1353 = vmul.f32 %v1350, %v1352
  %v1354 = vadd.f32 %v1350, %v1353
  %vm1355 = vweird.f32 %v726
  %vm1356 = vweird.f32 %v1350
  %vm1357 = vmor %vm1355, %vm1356
  %v1358 = vsel %vm1357, %v1350, %v1354
  %v1359 = vand.u32 2147483647, %v726
  %vm1360 = vcmp.eq.f32.partialorder %v1359, 8.507059e+37
  %v1361 = vand.u32 %v726, 2147483648
  %v1362 = vor.u32 1.1754944e-38, %v1361
  %v1363 = vsel %vm1360, %v1362, %v1358
  %v1364 = vmul.f32 1.0, %v1363
  %v1365 = vrcp.pop %v727
  %v1366 = vmul.f32 %v727, %v1365
  %v1367 = vsub.f32 1.0, %v1366
  %v1368 = vmul.f32 %v1365, %v1367
  %v1369 = vadd.f32 %v1365, %v1368
  %vm1370 = vweird.f32 %v727
  %vm1371 = vweird.f32 %v1365
  %vm1372 = vmor %vm1370, %vm1371
  %v1373 = vsel %vm1372, %v1365, %v1369
  %v1374 = vand.u32 2147483647, %v727
  %vm1375 = vcmp.eq.f32.partialorder %v1374, 8.507059e+37
  %v1376 = vand.u32 %v727, 2147483648
  %v1377 = vor.u32 1.1754944e-38, %v1376
  %v1378 = vsel %vm1375, %v1377, %v1373
  %v1379 = vmul.f32 1.0, %v1378
  %v1380 = vrcp.pop %v728
  %v1381 = vmul.f32 %v728, %v1380
  %v1382 = vsub.f32 1.0, %v1381
  %v1383 = vmul.f32 %v1380, %v1382
  %v1384 = vadd.f32 %v1380, %v1383
  %vm1385 = vweird.f32 %v728
  %vm1386 = vweird.f32 %v1380
  %vm1387 = vmor %vm1385, %vm1386
  %v1388 = vsel %vm1387, %v1380, %v1384
  %v1389 = vand.u32 2147483647, %v728
  %vm1390 = vcmp.eq.f32.partialorder %v1389, 8.507059e+37
  %v1391 = vand.u32 %v728, 2147483648
  %v1392 = vor.u32 1.1754944e-38, %v1391
  %v1393 = vsel %vm1390, %v1392, %v1388
  %v1394 = vmul.f32 1.0, %v1393
  %v1395 = vrcp.pop %v729
  %v1396 = vmul.f32 %v729, %v1395
  %v1397 = vsub.f32 1.0, %v1396
  %v1398 = vmul.f32 %v1395, %v1397
  %v1399 = vadd.f32 %v1395, %v1398
  %vm1400 = vweird.f32 %v729
  %vm1401 = vweird.f32 %v1395
  %vm1402 = vmor %vm1400, %vm1401
  %v1403 = vsel %vm1402, %v1395, %v1399
  %v1404 = vand.u32 2147483647, %v729
  %vm1405 = vcmp.eq.f32.partialorder %v1404, 8.507059e+37
  %v1406 = vand.u32 %v729, 2147483648
  %v1407 = vor.u32 1.1754944e-38, %v1406
  %v1408 = vsel %vm1405, %v1407, %v1403
  %v1409 = vmul.f32 1.0, %v1408
  %v1410 = vrcp.pop %v730
  %v1411 = vmul.f32 %v730, %v1410
  %v1412 = vsub.f32 1.0, %v1411
  %v1413 = vmul.f32 %v1410, %v1412
  %v1414 = vadd.f32 %v1410, %v1413
  %vm1415 = vweird.f32 %v730
  %vm1416 = vweird.f32 %v1410
  %vm1417 = vmor %vm1415, %vm1416
  %v1418 = vsel %vm1417, %v1410, %v1414
  %v1419 = vand.u32 2147483647, %v730
  %vm1420 = vcmp.eq.f32.partialorder %v1419, 8.507059e+37
  %v1421 = vand.u32 %v730, 2147483648
  %v1422 = vor.u32 1.1754944e-38, %v1421
  %v1423 = vsel %vm1420, %v1422, %v1418
  %v1424 = vmul.f32 1.0, %v1423
  %v1425 = vrcp.pop %v731
  %v1426 = vmul.f32 %v731, %v1425
  %v1427 = vsub.f32 1.0, %v1426
  %v1428 = vmul.f32 %v1425, %v1427
  %v1429 = vadd.f32 %v1425, %v1428
  %vm1430 = vweird.f32 %v731
  %vm1431 = vweird.f32 %v1425
  %vm1432 = vmor %vm1430, %vm1431
  %v1433 = vsel %vm1432, %v1425, %v1429
  %v1434 = vand.u32 2147483647, %v731
  %vm1435 = vcmp.eq.f32.partialorder %v1434, 8.507059e+37
  %v1436 = vand.u32 %v731, 2147483648
  %v1437 = vor.u32 1.1754944e-38, %v1436
  %v1438 = vsel %vm1435, %v1437, %v1433
  %v1439 = vmul.f32 1.0, %v1438
  %v1440 = vrcp.pop %v732
  %v1441 = vmul.f32 %v732, %v1440
  %v1442 = vsub.f32 1.0, %v1441
  %v1443 = vmul.f32 %v1440, %v1442
  %v1444 = vadd.f32 %v1440, %v1443
  %vm1445 = vweird.f32 %v732
  %vm1446 = vweird.f32 %v1440
  %vm1447 = vmor %vm1445, %vm1446
  %v1448 = vsel %vm1447, %v1440, %v1444
  %v1449 = vand.u32 2147483647, %v732
  %vm1450 = vcmp.eq.f32.partialorder %v1449, 8.507059e+37
  %v1451 = vand.u32 %v732, 2147483648
  %v1452 = vor.u32 1.1754944e-38, %v1451
  %v1453 = vsel %vm1450, %v1452, %v1448
  %v1454 = vmul.f32 1.0, %v1453
  %v1455 = vrcp.pop %v733
  %v1456 = vmul.f32 %v733, %v1455
  %v1457 = vsub.f32 1.0, %v1456
  %v1458 = vmul.f32 %v1455, %v1457
  %v1459 = vadd.f32 %v1455, %v1458
  %vm1460 = vweird.f32 %v733
  %vm1461 = vweird.f32 %v1455
  %vm1462 = vmor %vm1460, %vm1461
  %v1463 = vsel %vm1462, %v1455, %v1459
  %v1464 = vand.u32 2147483647, %v733
  %vm1465 = vcmp.eq.f32.partialorder %v1464, 8.507059e+37
  %v1466 = vand.u32 %v733, 2147483648
  %v1467 = vor.u32 1.1754944e-38, %v1466
  %v1468 = vsel %vm1465, %v1467, %v1463
  %v1469 = vmul.f32 1.0, %v1468
  %v1470 = vrcp.pop %v734
  %v1471 = vmul.f32 %v734, %v1470
  %v1472 = vsub.f32 1.0, %v1471
  %v1473 = vmul.f32 %v1470, %v1472
  %v1474 = vadd.f32 %v1470, %v1473
  %vm1475 = vweird.f32 %v734
  %vm1476 = vweird.f32 %v1470
  %vm1477 = vmor %vm1475, %vm1476
  %v1478 = vsel %vm1477, %v1470, %v1474
  %v1479 = vand.u32 2147483647, %v734
  %vm1480 = vcmp.eq.f32.partialorder %v1479, 8.507059e+37
  %v1481 = vand.u32 %v734, 2147483648
  %v1482 = vor.u32 1.1754944e-38, %v1481
  %v1483 = vsel %vm1480, %v1482, %v1478
  %v1484 = vmul.f32 1.0, %v1483
  %v1485 = vrcp.pop %v735
  %v1486 = vmul.f32 %v735, %v1485
  %v1487 = vsub.f32 1.0, %v1486
  %v1488 = vmul.f32 %v1485, %v1487
  %v1489 = vadd.f32 %v1485, %v1488
  %vm1490 = vweird.f32 %v735
  %vm1491 = vweird.f32 %v1485
  %vm1492 = vmor %vm1490, %vm1491
  %v1493 = vsel %vm1492, %v1485, %v1489
  %v1494 = vand.u32 2147483647, %v735
  %vm1495 = vcmp.eq.f32.partialorder %v1494, 8.507059e+37
  %v1496 = vand.u32 %v735, 2147483648
  %v1497 = vor.u32 1.1754944e-38, %v1496
  %v1498 = vsel %vm1495, %v1497, %v1493
  %v1499 = vmul.f32 1.0, %v1498
  %v1500 = vrcp.pop %v736
  %v1501 = vmul.f32 %v736, %v1500
  %v1502 = vsub.f32 1.0, %v1501
  %v1503 = vmul.f32 %v1500, %v1502
  %v1504 = vadd.f32 %v1500, %v1503
  %vm1505 = vweird.f32 %v736
  %vm1506 = vweird.f32 %v1500
  %vm1507 = vmor %vm1505, %vm1506
  %v1508 = vsel %vm1507, %v1500, %v1504
  %v1509 = vand.u32 2147483647, %v736
  %vm1510 = vcmp.eq.f32.partialorder %v1509, 8.507059e+37
  %v1511 = vand.u32 %v736, 2147483648
  %v1512 = vor.u32 1.1754944e-38, %v1511
  %v1513 = vsel %vm1510, %v1512, %v1508
  %v1514 = vmul.f32 1.0, %v1513
  %v1515 = vrcp.pop %v737
  %v1516 = vmul.f32 %v737, %v1515
  %v1517 = vsub.f32 1.0, %v1516
  %v1518 = vmul.f32 %v1515, %v1517
  %v1519 = vadd.f32 %v1515, %v1518
  %vm1520 = vweird.f32 %v737
  %vm1521 = vweird.f32 %v1515
  %vm1522 = vmor %vm1520, %vm1521
  %v1523 = vsel %vm1522, %v1515, %v1519
  %v1524 = vand.u32 2147483647, %v737
  %vm1525 = vcmp.eq.f32.partialorder %v1524, 8.507059e+37
  %v1526 = vand.u32 %v737, 2147483648
  %v1527 = vor.u32 1.1754944e-38, %v1526
  %v1528 = vsel %vm1525, %v1527, %v1523
  %v1529 = vmul.f32 1.0, %v1528
  %v1530 = vrcp.pop %v738
  %v1531 = vmul.f32 %v738, %v1530
  %v1532 = vsub.f32 1.0, %v1531
  %v1533 = vmul.f32 %v1530, %v1532
  %v1534 = vadd.f32 %v1530, %v1533
  %vm1535 = vweird.f32 %v738
  %vm1536 = vweird.f32 %v1530
  %vm1537 = vmor %vm1535, %vm1536
  %v1538 = vsel %vm1537, %v1530, %v1534
  %v1539 = vand.u32 2147483647, %v738
  %vm1540 = vcmp.eq.f32.partialorder %v1539, 8.507059e+37
  %v1541 = vand.u32 %v738, 2147483648
  %v1542 = vor.u32 1.1754944e-38, %v1541
  %v1543 = vsel %vm1540, %v1542, %v1538
  %v1544 = vmul.f32 1.0, %v1543
  %v1545 = vrcp.pop %v739
  %v1546 = vmul.f32 %v739, %v1545
  %v1547 = vsub.f32 1.0, %v1546
  %v1548 = vmul.f32 %v1545, %v1547
  %v1549 = vadd.f32 %v1545, %v1548
  %vm1550 = vweird.f32 %v739
  %vm1551 = vweird.f32 %v1545
  %vm1552 = vmor %vm1550, %vm1551
  %v1553 = vsel %vm1552, %v1545, %v1549
  %v1554 = vand.u32 2147483647, %v739
  %vm1555 = vcmp.eq.f32.partialorder %v1554, 8.507059e+37
  %v1556 = vand.u32 %v739, 2147483648
  %v1557 = vor.u32 1.1754944e-38, %v1556
  %v1558 = vsel %vm1555, %v1557, %v1553
  %v1559 = vmul.f32 1.0, %v1558
  %v1560 = vrcp.pop %v740
  %v1561 = vmul.f32 %v740, %v1560
  %v1562 = vsub.f32 1.0, %v1561
  %v1563 = vmul.f32 %v1560, %v1562
  %v1564 = vadd.f32 %v1560, %v1563
  %vm1565 = vweird.f32 %v740
  %vm1566 = vweird.f32 %v1560
  %vm1567 = vmor %vm1565, %vm1566
  %v1568 = vsel %vm1567, %v1560, %v1564
  %v1569 = vand.u32 2147483647, %v740
  %vm1570 = vcmp.eq.f32.partialorder %v1569, 8.507059e+37
  %v1571 = vand.u32 %v740, 2147483648
  %v1572 = vor.u32 1.1754944e-38, %v1571
  %v1573 = vsel %vm1570, %v1572, %v1568
  %v1574 = vmul.f32 1.0, %v1573
  %v1575 = vrcp.pop %v741
  %v1576 = vmul.f32 %v741, %v1575
  %v1577 = vsub.f32 1.0, %v1576
  %v1578 = vmul.f32 %v1575, %v1577
  %v1579 = vadd.f32 %v1575, %v1578
  %vm1580 = vweird.f32 %v741
  %vm1581 = vweird.f32 %v1575
  %vm1582 = vmor %vm1580, %vm1581
  %v1583 = vsel %vm1582, %v1575, %v1579
  %v1584 = vand.u32 2147483647, %v741
  %vm1585 = vcmp.eq.f32.partialorder %v1584, 8.507059e+37
  %v1586 = vand.u32 %v741, 2147483648
  %v1587 = vor.u32 1.1754944e-38, %v1586
  %v1588 = vsel %vm1585, %v1587, %v1583
  %v1589 = vmul.f32 1.0, %v1588
  %v1590 = vrcp.pop %v742
  %v1591 = vmul.f32 %v742, %v1590
  %v1592 = vsub.f32 1.0, %v1591
  %v1593 = vmul.f32 %v1590, %v1592
  %v1594 = vadd.f32 %v1590, %v1593
  %vm1595 = vweird.f32 %v742
  %vm1596 = vweird.f32 %v1590
  %vm1597 = vmor %vm1595, %vm1596
  %v1598 = vsel %vm1597, %v1590, %v1594
  %v1599 = vand.u32 2147483647, %v742
  %vm1600 = vcmp.eq.f32.partialorder %v1599, 8.507059e+37
  %v1601 = vand.u32 %v742, 2147483648
  %v1602 = vor.u32 1.1754944e-38, %v1601
  %v1603 = vsel %vm1600, %v1602, %v1598
  %v1604 = vmul.f32 1.0, %v1603
  %v1605 = vrcp.pop %v743
  %v1606 = vmul.f32 %v743, %v1605
  %v1607 = vsub.f32 1.0, %v1606
  %v1608 = vmul.f32 %v1605, %v1607
  %v1609 = vadd.f32 %v1605, %v1608
  %vm1610 = vweird.f32 %v743
  %vm1611 = vweird.f32 %v1605
  %vm1612 = vmor %vm1610, %vm1611
  %v1613 = vsel %vm1612, %v1605, %v1609
  %v1614 = vand.u32 2147483647, %v743
  %vm1615 = vcmp.eq.f32.partialorder %v1614, 8.507059e+37
  %v1616 = vand.u32 %v743, 2147483648
  %v1617 = vor.u32 1.1754944e-38, %v1616
  %v1618 = vsel %vm1615, %v1617, %v1613
  %v1619 = vmul.f32 1.0, %v1618
  %v1620 = vrcp.pop %v744
  %v1621 = vmul.f32 %v744, %v1620
  %v1622 = vsub.f32 1.0, %v1621
  %v1623 = vmul.f32 %v1620, %v1622
  %v1624 = vadd.f32 %v1620, %v1623
  %vm1625 = vweird.f32 %v744
  %vm1626 = vweird.f32 %v1620
  %vm1627 = vmor %vm1625, %vm1626
  %v1628 = vsel %vm1627, %v1620, %v1624
  %v1629 = vand.u32 2147483647, %v744
  %vm1630 = vcmp.eq.f32.partialorder %v1629, 8.507059e+37
  %v1631 = vand.u32 %v744, 2147483648
  %v1632 = vor.u32 1.1754944e-38, %v1631
  %v1633 = vsel %vm1630, %v1632, %v1628
  %v1634 = vmul.f32 1.0, %v1633
  %v1635 = vrcp.pop %v745
  %v1636 = vmul.f32 %v745, %v1635
  %v1637 = vsub.f32 1.0, %v1636
  %v1638 = vmul.f32 %v1635, %v1637
  %v1639 = vadd.f32 %v1635, %v1638
  %vm1640 = vweird.f32 %v745
  %vm1641 = vweird.f32 %v1635
  %vm1642 = vmor %vm1640, %vm1641
  %v1643 = vsel %vm1642, %v1635, %v1639
  %v1644 = vand.u32 2147483647, %v745
  %vm1645 = vcmp.eq.f32.partialorder %v1644, 8.507059e+37
  %v1646 = vand.u32 %v745, 2147483648
  %v1647 = vor.u32 1.1754944e-38, %v1646
  %v1648 = vsel %vm1645, %v1647, %v1643
  %v1649 = vmul.f32 1.0, %v1648
  %v1650 = vrcp.pop %v746
  %v1651 = vmul.f32 %v746, %v1650
  %v1652 = vsub.f32 1.0, %v1651
  %v1653 = vmul.f32 %v1650, %v1652
  %v1654 = vadd.f32 %v1650, %v1653
  %vm1655 = vweird.f32 %v746
  %vm1656 = vweird.f32 %v1650
  %vm1657 = vmor %vm1655, %vm1656
  %v1658 = vsel %vm1657, %v1650, %v1654
  %v1659 = vand.u32 2147483647, %v746
  %vm1660 = vcmp.eq.f32.partialorder %v1659, 8.507059e+37
  %v1661 = vand.u32 %v746, 2147483648
  %v1662 = vor.u32 1.1754944e-38, %v1661
  %v1663 = vsel %vm1660, %v1662, %v1658
  %v1664 = vmul.f32 1.0, %v1663
  %v1665 = vrcp.pop %v747
  %v1666 = vmul.f32 %v747, %v1665
  %v1667 = vsub.f32 1.0, %v1666
  %v1668 = vmul.f32 %v1665, %v1667
  %v1669 = vadd.f32 %v1665, %v1668
  %vm1670 = vweird.f32 %v747
  %vm1671 = vweird.f32 %v1665
  %vm1672 = vmor %vm1670, %vm1671
  %v1673 = vsel %vm1672, %v1665, %v1669
  %v1674 = vand.u32 2147483647, %v747
  %vm1675 = vcmp.eq.f32.partialorder %v1674, 8.507059e+37
  %v1676 = vand.u32 %v747, 2147483648
  %v1677 = vor.u32 1.1754944e-38, %v1676
  %v1678 = vsel %vm1675, %v1677, %v1673
  %v1679 = vmul.f32 1.0, %v1678
  %v1680 = vrcp.pop %v748
  %v1681 = vmul.f32 %v748, %v1680
  %v1682 = vsub.f32 1.0, %v1681
  %v1683 = vmul.f32 %v1680, %v1682
  %v1684 = vadd.f32 %v1680, %v1683
  %vm1685 = vweird.f32 %v748
  %vm1686 = vweird.f32 %v1680
  %vm1687 = vmor %vm1685, %vm1686
  %v1688 = vsel %vm1687, %v1680, %v1684
  %v1689 = vand.u32 2147483647, %v748
  %vm1690 = vcmp.eq.f32.partialorder %v1689, 8.507059e+37
  %v1691 = vand.u32 %v748, 2147483648
  %v1692 = vor.u32 1.1754944e-38, %v1691
  %v1693 = vsel %vm1690, %v1692, %v1688
  %v1694 = vmul.f32 1.0, %v1693
  %v1695 = vrcp.pop %v749
  %v1696 = vmul.f32 %v749, %v1695
  %v1697 = vsub.f32 1.0, %v1696
  %v1698 = vmul.f32 %v1695, %v1697
  %v1699 = vadd.f32 %v1695, %v1698
  %vm1700 = vweird.f32 %v749
  %vm1701 = vweird.f32 %v1695
  %vm1702 = vmor %vm1700, %vm1701
  %v1703 = vsel %vm1702, %v1695, %v1699
  %v1704 = vand.u32 2147483647, %v749
  %vm1705 = vcmp.eq.f32.partialorder %v1704, 8.507059e+37
  %v1706 = vand.u32 %v749, 2147483648
  %v1707 = vor.u32 1.1754944e-38, %v1706
  %v1708 = vsel %vm1705, %v1707, %v1703
  %v1709 = vmul.f32 1.0, %v1708
  %v1710 = vmul.f32 %v303, %v764
  %v1711 = vmul.f32 %v306, %v779
  %v1712 = vmul.f32 %v309, %v794
  %v1713 = vmul.f32 %v312, %v809
  %v1714 = vmul.f32 %v315, %v824
  %v1715 = vmul.f32 %v318, %v839
  %v1716 = vmul.f32 %v321, %v854
  %v1717 = vmul.f32 %v324, %v869
  %v1718 = vmul.f32 %v327, %v884
  %v1719 = vmul.f32 %v330, %v899
  %v1720 = vmul.f32 %v333, %v914
  %v1721 = vmul.f32 %v336, %v929
  %v1722 = vmul.f32 %v339, %v944
  %v1723 = vmul.f32 %v342, %v959
  %v1724 = vmul.f32 %v345, %v974
  %v1725 = vmul.f32 %v348, %v989
  %v1726 = vmul.f32 %v351, %v1004
  %v1727 = vmul.f32 %v354, %v1019
  %v1728 = vmul.f32 %v357, %v1034
  %v1729 = vmul.f32 %v360, %v1049
  %v1730 = vmul.f32 %v363, %v1064
  %v1731 = vmul.f32 %v366, %v1079
  %v1732 = vmul.f32 %v369, %v1094
  %v1733 = vmul.f32 %v372, %v1109
  %v1734 = vmul.f32 %v375, %v1124
  %v1735 = vmul.f32 %v378, %v1139
  %v1736 = vmul.f32 %v381, %v1154
  %v1737 = vmul.f32 %v384, %v1169
  %v1738 = vmul.f32 %v387, %v1184
  %v1739 = vmul.f32 %v390, %v1199
  %v1740 = vmul.f32 %v393, %v1214
  %v1741 = vmul.f32 %v396, %v1229
  %v1742 = vmul.f32 %v399, %v1244
  %v1743 = vmul.f32 %v402, %v1259
  %v1744 = vmul.f32 %v405, %v1274
  %v1745 = vmul.f32 %v408, %v1289
  %v1746 = vmul.f32 %v411, %v1304
  %v1747 = vmul.f32 %v414, %v1319
  %v1748 = vmul.f32 %v417, %v1334
  %v1749 = vmul.f32 %v420, %v1349
  %v1750 = vmul.f32 %v423, %v1364
  %v1751 = vmul.f32 %v426, %v1379
  %v1752 = vmul.f32 %v429, %v1394
  %v1753 = vmul.f32 %v432, %v1409
  %v1754 = vmul.f32 %v435, %v1424
  %v1755 = vmul.f32 %v438, %v1439
  %v1756 = vmul.f32 %v441, %v1454
  %v1757 = vmul.f32 %v444, %v1469
  %v1758 = vmul.f32 %v447, %v1484
  %v1759 = vmul.f32 %v450, %v1499
  %v1760 = vmul.f32 %v453, %v1514
  %v1761 = vmul.f32 %v456, %v1529
  %v1762 = vmul.f32 %v459, %v1544
  %v1763 = vmul.f32 %v462, %v1559
  %v1764 = vmul.f32 %v465, %v1574
  %v1765 = vmul.f32 %v468, %v1589
  %v1766 = vmul.f32 %v471, %v1604
  %v1767 = vmul.f32 %v474, %v1619
  %v1768 = vmul.f32 %v477, %v1634
  %v1769 = vmul.f32 %v480, %v1649
  %v1770 = vmul.f32 %v483, %v1664
  %v1771 = vmul.f32 %v486, %v1679
  %v1772 = vmul.f32 %v489, %v1694
  %v1773 = vmul.f32 %v492, %v1709
  %vm1774 = vcmask 15360
  %1775 = vst.msk [vmem:[%s4] sm:$0xff] %vm1774, %v1710
  %1776 = vst.msk [vmem:[%s4 + $0x8] sm:$0xff] %vm1774, %v1711
  %1777 = vst.msk [vmem:[%s4 + $0x10] sm:$0xff] %vm1774, %v1712
  %1778 = vst.msk [vmem:[%s4 + $0x18] sm:$0xff] %vm1774, %v1713
  %1779 = vst.msk [vmem:[%s4 + $0x20] sm:$0xff] %vm1774, %v1714
  %1780 = vst.msk [vmem:[%s4 + $0x28] sm:$0xff] %vm1774, %v1715
  %1781 = vst.msk [vmem:[%s4 + $0x30] sm:$0xff] %vm1774, %v1716
  %1782 = vst.msk [vmem:[%s4 + $0x38] sm:$0xff] %vm1774, %v1717
  %1783 = vst.msk [vmem:[%s4 + $0x40] sm:$0xff] %vm1774, %v1718
  %1784 = vst.msk [vmem:[%s4 + $0x48] sm:$0xff] %vm1774, %v1719
  %1785 = vst.msk [vmem:[%s4 + $0x50] sm:$0xff] %vm1774, %v1720
  %1786 = vst.msk [vmem:[%s4 + $0x58] sm:$0xff] %vm1774, %v1721
  %1787 = vst.msk [vmem:[%s4 + $0x60] sm:$0xff] %vm1774, %v1722
  %1788 = vst.msk [vmem:[%s4 + $0x68] sm:$0xff] %vm1774, %v1723
  %1789 = vst.msk [vmem:[%s4 + $0x70] sm:$0xff] %vm1774, %v1724
  %1790 = vst.msk [vmem:[%s4 + $0x78] sm:$0xff] %vm1774, %v1725
  %1791 = vst.msk [vmem:[%s4 + $0x80] sm:$0xff] %vm1774, %v1726
  %1792 = vst.msk [vmem:[%s4 + $0x88] sm:$0xff] %vm1774, %v1727
  %1793 = vst.msk [vmem:[%s4 + $0x90] sm:$0xff] %vm1774, %v1728
  %1794 = vst.msk [vmem:[%s4 + $0x98] sm:$0xff] %vm1774, %v1729
  %1795 = vst.msk [vmem:[%s4 + $0xa0] sm:$0xff] %vm1774, %v1730
  %1796 = vst.msk [vmem:[%s4 + $0xa8] sm:$0xff] %vm1774, %v1731
  %1797 = vst.msk [vmem:[%s4 + $0xb0] sm:$0xff] %vm1774, %v1732
  %1798 = vst.msk [vmem:[%s4 + $0xb8] sm:$0xff] %vm1774, %v1733
  %1799 = vst.msk [vmem:[%s4 + $0xc0] sm:$0xff] %vm1774, %v1734
  %1800 = vst.msk [vmem:[%s4 + $0xc8] sm:$0xff] %vm1774, %v1735
  %1801 = vst.msk [vmem:[%s4 + $0xd0] sm:$0xff] %vm1774, %v1736
  %1802 = vst.msk [vmem:[%s4 + $0xd8] sm:$0xff] %vm1774, %v1737
  %1803 = vst.msk [vmem:[%s4 + $0xe0] sm:$0xff] %vm1774, %v1738
  %1804 = vst.msk [vmem:[%s4 + $0xe8] sm:$0xff] %vm1774, %v1739
  %1805 = vst.msk [vmem:[%s4 + $0xf0] sm:$0xff] %vm1774, %v1740
  %1806 = vst.msk [vmem:[%s4 + $0xf8] sm:$0xff] %vm1774, %v1741
  %1807 = vst.msk [vmem:[%s4 + $0x100] sm:$0xff] %vm1774, %v1742
  %1808 = vst.msk [vmem:[%s4 + $0x108] sm:$0xff] %vm1774, %v1743
  %1809 = vst.msk [vmem:[%s4 + $0x110] sm:$0xff] %vm1774, %v1744
  %1810 = vst.msk [vmem:[%s4 + $0x118] sm:$0xff] %vm1774, %v1745
  %1811 = vst.msk [vmem:[%s4 + $0x120] sm:$0xff] %vm1774, %v1746
  %1812 = vst.msk [vmem:[%s4 + $0x128] sm:$0xff] %vm1774, %v1747
  %1813 = vst.msk [vmem:[%s4 + $0x130] sm:$0xff] %vm1774, %v1748
  %1814 = vst.msk [vmem:[%s4 + $0x138] sm:$0xff] %vm1774, %v1749
  %1815 = vst.msk [vmem:[%s4 + $0x140] sm:$0xff] %vm1774, %v1750
  %1816 = vst.msk [vmem:[%s4 + $0x148] sm:$0xff] %vm1774, %v1751
  %1817 = vst.msk [vmem:[%s4 + $0x150] sm:$0xff] %vm1774, %v1752
  %1818 = vst.msk [vmem:[%s4 + $0x158] sm:$0xff] %vm1774, %v1753
  %1819 = vst.msk [vmem:[%s4 + $0x160] sm:$0xff] %vm1774, %v1754
  %1820 = vst.msk [vmem:[%s4 + $0x168] sm:$0xff] %vm1774, %v1755
  %1821 = vst.msk [vmem:[%s4 + $0x170] sm:$0xff] %vm1774, %v1756
  %1822 = vst.msk [vmem:[%s4 + $0x178] sm:$0xff] %vm1774, %v1757
  %1823 = vst.msk [vmem:[%s4 + $0x180] sm:$0xff] %vm1774, %v1758
  %1824 = vst.msk [vmem:[%s4 + $0x188] sm:$0xff] %vm1774, %v1759
  %1825 = vst.msk [vmem:[%s4 + $0x190] sm:$0xff] %vm1774, %v1760
  %1826 = vst.msk [vmem:[%s4 + $0x198] sm:$0xff] %vm1774, %v1761
  %1827 = vst.msk [vmem:[%s4 + $0x1a0] sm:$0xff] %vm1774, %v1762
  %1828 = vst.msk [vmem:[%s4 + $0x1a8] sm:$0xff] %vm1774, %v1763
  %1829 = vst.msk [vmem:[%s4 + $0x1b0] sm:$0xff] %vm1774, %v1764
  %1830 = vst.msk [vmem:[%s4 + $0x1b8] sm:$0xff] %vm1774, %v1765
  %1831 = vst.msk [vmem:[%s4 + $0x1c0] sm:$0xff] %vm1774, %v1766
  %1832 = vst.msk [vmem:[%s4 + $0x1c8] sm:$0xff] %vm1774, %v1767
  %1833 = vst.msk [vmem:[%s4 + $0x1d0] sm:$0xff] %vm1774, %v1768
  %1834 = vst.msk [vmem:[%s4 + $0x1d8] sm:$0xff] %vm1774, %v1769
  %1835 = vst.msk [vmem:[%s4 + $0x1e0] sm:$0xff] %vm1774, %v1770
  %1836 = vst.msk [vmem:[%s4 + $0x1e8] sm:$0xff] %vm1774, %v1771
  %1837 = vst.msk [vmem:[%s4 + $0x1f0] sm:$0xff] %vm1774, %v1772
  %1838 = vst.msk [vmem:[%s4 + $0x1f8] sm:$0xff] %vm1774, %v1773
  %v1839 = vld [vmem:[%s3] sm:$0xf]
  %v1841 = vsel %vm281, %v1839, 0
  %1843 = vmatpush.msra.mxu0 0.0
  %1844 = vmatpush.msra.mxu0 0.0
  %1845 = vmatpush.msra.mxu0 0.0
  %1846 = vmatpush.msra.mxu0 0.0
  %1847 = vmatpush.msra.mxu0 0.0
  %1848 = vmatpush.msra.mxu0 0.0
  %1849 = vmatpush.msra.mxu0 0.0
  %1850 = vmatpush.msra.mxu0 0.0
  %1851 = vmatpush.msra.mxu0 0.0
  %1852 = vmatpush.msra.mxu0 0.0
  %1853 = vmatpush.msra.mxu0 0.0
  %1854 = vmatpush.msra.mxu0 0.0
  %1855 = vmatpush.msra.mxu0 0.0
  %1856 = vmatpush.msra.mxu0 0.0
  %1857 = vmatpush.msra.mxu0 0.0
  %1858 = vmatpush.msra.mxu0 %v1841
  %1859 = vmatmul.f32.gmra.mxu0 %v90
  %v1860 = vpop.f32.mrf.mxu0
  %v1861 = vadd.f32 0.0, %v1860
  %1862 = vmatmul.f32.gmra.mxu0 %v93
  %v1863 = vpop.f32.mrf.mxu0
  %v1864 = vadd.f32 0.0, %v1863
  %1865 = vmatmul.f32.gmra.mxu0 %v96
  %v1866 = vpop.f32.mrf.mxu0
  %v1867 = vadd.f32 0.0, %v1866
  %1868 = vmatmul.f32.gmra.mxu0 %v99
  %v1869 = vpop.f32.mrf.mxu0
  %v1870 = vadd.f32 0.0, %v1869
  %1871 = vmatmul.f32.gmra.mxu0 %v102
  %v1872 = vpop.f32.mrf.mxu0
  %v1873 = vadd.f32 0.0, %v1872
  %1874 = vmatmul.f32.gmra.mxu0 %v105
  %v1875 = vpop.f32.mrf.mxu0
  %v1876 = vadd.f32 0.0, %v1875
  %1877 = vmatmul.f32.gmra.mxu0 %v108
  %v1878 = vpop.f32.mrf.mxu0
  %v1879 = vadd.f32 0.0, %v1878
  %1880 = vmatmul.f32.gmra.mxu0 %v111
  %v1881 = vpop.f32.mrf.mxu0
  %v1882 = vadd.f32 0.0, %v1881
  %1883 = vmatmul.f32.gmra.mxu0 %v114
  %v1884 = vpop.f32.mrf.mxu0
  %v1885 = vadd.f32 0.0, %v1884
  %1886 = vmatmul.f32.gmra.mxu0 %v117
  %v1887 = vpop.f32.mrf.mxu0
  %v1888 = vadd.f32 0.0, %v1887
  %1889 = vmatmul.f32.gmra.mxu0 %v120
  %v1890 = vpop.f32.mrf.mxu0
  %v1891 = vadd.f32 0.0, %v1890
  %1892 = vmatmul.f32.gmra.mxu0 %v123
  %v1893 = vpop.f32.mrf.mxu0
  %v1894 = vadd.f32 0.0, %v1893
  %1895 = vmatmul.f32.gmra.mxu0 %v126
  %v1896 = vpop.f32.mrf.mxu0
  %v1897 = vadd.f32 0.0, %v1896
  %1898 = vmatmul.f32.gmra.mxu0 %v129
  %v1899 = vpop.f32.mrf.mxu0
  %v1900 = vadd.f32 0.0, %v1899
  %1901 = vmatmul.f32.gmra.mxu0 %v132
  %v1902 = vpop.f32.mrf.mxu0
  %v1903 = vadd.f32 0.0, %v1902
  %1904 = vmatmul.f32.gmra.mxu0 %v135
  %v1905 = vpop.f32.mrf.mxu0
  %v1906 = vadd.f32 0.0, %v1905
  %1907 = vmatmul.f32.gmra.mxu0 %v138
  %v1908 = vpop.f32.mrf.mxu0
  %v1909 = vadd.f32 0.0, %v1908
  %1910 = vmatmul.f32.gmra.mxu0 %v141
  %v1911 = vpop.f32.mrf.mxu0
  %v1912 = vadd.f32 0.0, %v1911
  %1913 = vmatmul.f32.gmra.mxu0 %v144
  %v1914 = vpop.f32.mrf.mxu0
  %v1915 = vadd.f32 0.0, %v1914
  %1916 = vmatmul.f32.gmra.mxu0 %v147
  %v1917 = vpop.f32.mrf.mxu0
  %v1918 = vadd.f32 0.0, %v1917
  %1919 = vmatmul.f32.gmra.mxu0 %v150
  %v1920 = vpop.f32.mrf.mxu0
  %v1921 = vadd.f32 0.0, %v1920
  %1922 = vmatmul.f32.gmra.mxu0 %v153
  %v1923 = vpop.f32.mrf.mxu0
  %v1924 = vadd.f32 0.0, %v1923
  %1925 = vmatmul.f32.gmra.mxu0 %v156
  %v1926 = vpop.f32.mrf.mxu0
  %v1927 = vadd.f32 0.0, %v1926
  %1928 = vmatmul.f32.gmra.mxu0 %v159
  %v1929 = vpop.f32.mrf.mxu0
  %v1930 = vadd.f32 0.0, %v1929
  %1931 = vmatmul.f32.gmra.mxu0 %v162
  %v1932 = vpop.f32.mrf.mxu0
  %v1933 = vadd.f32 0.0, %v1932
  %1934 = vmatmul.f32.gmra.mxu0 %v165
  %v1935 = vpop.f32.mrf.mxu0
  %v1936 = vadd.f32 0.0, %v1935
  %1937 = vmatmul.f32.gmra.mxu0 %v168
  %v1938 = vpop.f32.mrf.mxu0
  %v1939 = vadd.f32 0.0, %v1938
  %1940 = vmatmul.f32.gmra.mxu0 %v171
  %v1941 = vpop.f32.mrf.mxu0
  %v1942 = vadd.f32 0.0, %v1941
  %1943 = vmatmul.f32.gmra.mxu0 %v174
  %v1944 = vpop.f32.mrf.mxu0
  %v1945 = vadd.f32 0.0, %v1944
  %1946 = vmatmul.f32.gmra.mxu0 %v177
  %v1947 = vpop.f32.mrf.mxu0
  %v1948 = vadd.f32 0.0, %v1947
  %1949 = vmatmul.f32.gmra.mxu0 %v180
  %v1950 = vpop.f32.mrf.mxu0
  %v1951 = vadd.f32 0.0, %v1950
  %1952 = vmatmul.f32.gmra.mxu0 %v183
  %v1953 = vpop.f32.mrf.mxu0
  %v1954 = vadd.f32 0.0, %v1953
  %1955 = vmatmul.f32.gmra.mxu0 %v186
  %v1956 = vpop.f32.mrf.mxu0
  %v1957 = vadd.f32 0.0, %v1956
  %1958 = vmatmul.f32.gmra.mxu0 %v189
  %v1959 = vpop.f32.mrf.mxu0
  %v1960 = vadd.f32 0.0, %v1959
  %1961 = vmatmul.f32.gmra.mxu0 %v192
  %v1962 = vpop.f32.mrf.mxu0
  %v1963 = vadd.f32 0.0, %v1962
  %1964 = vmatmul.f32.gmra.mxu0 %v195
  %v1965 = vpop.f32.mrf.mxu0
  %v1966 = vadd.f32 0.0, %v1965
  %1967 = vmatmul.f32.gmra.mxu0 %v198
  %v1968 = vpop.f32.mrf.mxu0
  %v1969 = vadd.f32 0.0, %v1968
  %1970 = vmatmul.f32.gmra.mxu0 %v201
  %v1971 = vpop.f32.mrf.mxu0
  %v1972 = vadd.f32 0.0, %v1971
  %1973 = vmatmul.f32.gmra.mxu0 %v204
  %v1974 = vpop.f32.mrf.mxu0
  %v1975 = vadd.f32 0.0, %v1974
  %1976 = vmatmul.f32.gmra.mxu0 %v207
  %v1977 = vpop.f32.mrf.mxu0
  %v1978 = vadd.f32 0.0, %v1977
  %1979 = vmatmul.f32.gmra.mxu0 %v210
  %v1980 = vpop.f32.mrf.mxu0
  %v1981 = vadd.f32 0.0, %v1980
  %1982 = vmatmul.f32.gmra.mxu0 %v213
  %v1983 = vpop.f32.mrf.mxu0
  %v1984 = vadd.f32 0.0, %v1983
  %1985 = vmatmul.f32.gmra.mxu0 %v216
  %v1986 = vpop.f32.mrf.mxu0
  %v1987 = vadd.f32 0.0, %v1986
  %1988 = vmatmul.f32.gmra.mxu0 %v219
  %v1989 = vpop.f32.mrf.mxu0
  %v1990 = vadd.f32 0.0, %v1989
  %1991 = vmatmul.f32.gmra.mxu0 %v222
  %v1992 = vpop.f32.mrf.mxu0
  %v1993 = vadd.f32 0.0, %v1992
  %1994 = vmatmul.f32.gmra.mxu0 %v225
  %v1995 = vpop.f32.mrf.mxu0
  %v1996 = vadd.f32 0.0, %v1995
  %1997 = vmatmul.f32.gmra.mxu0 %v228
  %v1998 = vpop.f32.mrf.mxu0
  %v1999 = vadd.f32 0.0, %v1998
  %2000 = vmatmul.f32.gmra.mxu0 %v231
  %v2001 = vpop.f32.mrf.mxu0
  %v2002 = vadd.f32 0.0, %v2001
  %2003 = vmatmul.f32.gmra.mxu0 %v234
  %v2004 = vpop.f32.mrf.mxu0
  %v2005 = vadd.f32 0.0, %v2004
  %2006 = vmatmul.f32.gmra.mxu0 %v237
  %v2007 = vpop.f32.mrf.mxu0
  %v2008 = vadd.f32 0.0, %v2007
  %2009 = vmatmul.f32.gmra.mxu0 %v240
  %v2010 = vpop.f32.mrf.mxu0
  %v2011 = vadd.f32 0.0, %v2010
  %2012 = vmatmul.f32.gmra.mxu0 %v243
  %v2013 = vpop.f32.mrf.mxu0
  %v2014 = vadd.f32 0.0, %v2013
  %2015 = vmatmul.f32.gmra.mxu0 %v246
  %v2016 = vpop.f32.mrf.mxu0
  %v2017 = vadd.f32 0.0, %v2016
  %2018 = vmatmul.f32.gmra.mxu0 %v249
  %v2019 = vpop.f32.mrf.mxu0
  %v2020 = vadd.f32 0.0, %v2019
  %2021 = vmatmul.f32.gmra.mxu0 %v252
  %v2022 = vpop.f32.mrf.mxu0
  %v2023 = vadd.f32 0.0, %v2022
  %2024 = vmatmul.f32.gmra.mxu0 %v255
  %v2025 = vpop.f32.mrf.mxu0
  %v2026 = vadd.f32 0.0, %v2025
  %2027 = vmatmul.f32.gmra.mxu0 %v258
  %v2028 = vpop.f32.mrf.mxu0
  %v2029 = vadd.f32 0.0, %v2028
  %2030 = vmatmul.f32.gmra.mxu0 %v261
  %v2031 = vpop.f32.mrf.mxu0
  %v2032 = vadd.f32 0.0, %v2031
  %2033 = vmatmul.f32.gmra.mxu0 %v264
  %v2034 = vpop.f32.mrf.mxu0
  %v2035 = vadd.f32 0.0, %v2034
  %2036 = vmatmul.f32.gmra.mxu0 %v267
  %v2037 = vpop.f32.mrf.mxu0
  %v2038 = vadd.f32 0.0, %v2037
  %2039 = vmatmul.f32.gmra.mxu0 %v270
  %v2040 = vpop.f32.mrf.mxu0
  %v2041 = vadd.f32 0.0, %v2040
  %2042 = vmatmul.f32.gmra.mxu0 %v273
  %v2043 = vpop.f32.mrf.mxu0
  %v2044 = vadd.f32 0.0, %v2043
  %2045 = vmatmul.f32.gmra.mxu0 %v276
  %v2046 = vpop.f32.mrf.mxu0
  %v2047 = vadd.f32 0.0, %v2046
  %2048 = vmatmul.f32.gmra.mxu0 %v279
  %v2049 = vpop.f32.mrf.mxu0
  %v2050 = vadd.f32 0.0, %v2049
  %2051 = vdwg.mxu0
  %2052 = vst.msk [vmem:[%s5] sm:$0xff] %vm1774, %v1861
  %2053 = vst.msk [vmem:[%s5 + $0x8] sm:$0xff] %vm1774, %v1864
  %2054 = vst.msk [vmem:[%s5 + $0x10] sm:$0xff] %vm1774, %v1867
  %2055 = vst.msk [vmem:[%s5 + $0x18] sm:$0xff] %vm1774, %v1870
  %2056 = vst.msk [vmem:[%s5 + $0x20] sm:$0xff] %vm1774, %v1873
  %2057 = vst.msk [vmem:[%s5 + $0x28] sm:$0xff] %vm1774, %v1876
  %2058 = vst.msk [vmem:[%s5 + $0x30] sm:$0xff] %vm1774, %v1879
  %2059 = vst.msk [vmem:[%s5 + $0x38] sm:$0xff] %vm1774, %v1882
  %2060 = vst.msk [vmem:[%s5 + $0x40] sm:$0xff] %vm1774, %v1885
  %2061 = vst.msk [vmem:[%s5 + $0x48] sm:$0xff] %vm1774, %v1888
  %2062 = vst.msk [vmem:[%s5 + $0x50] sm:$0xff] %vm1774, %v1891
  %2063 = vst.msk [vmem:[%s5 + $0x58] sm:$0xff] %vm1774, %v1894
  %2064 = vst.msk [vmem:[%s5 + $0x60] sm:$0xff] %vm1774, %v1897
  %2065 = vst.msk [vmem:[%s5 + $0x68] sm:$0xff] %vm1774, %v1900
  %2066 = vst.msk [vmem:[%s5 + $0x70] sm:$0xff] %vm1774, %v1903
  %2067 = vst.msk [vmem:[%s5 + $0x78] sm:$0xff] %vm1774, %v1906
  %2068 = vst.msk [vmem:[%s5 + $0x80] sm:$0xff] %vm1774, %v1909
  %2069 = vst.msk [vmem:[%s5 + $0x88] sm:$0xff] %vm1774, %v1912
  %2070 = vst.msk [vmem:[%s5 + $0x90] sm:$0xff] %vm1774, %v1915
  %2071 = vst.msk [vmem:[%s5 + $0x98] sm:$0xff] %vm1774, %v1918
  %2072 = vst.msk [vmem:[%s5 + $0xa0] sm:$0xff] %vm1774, %v1921
  %2073 = vst.msk [vmem:[%s5 + $0xa8] sm:$0xff] %vm1774, %v1924
  %2074 = vst.msk [vmem:[%s5 + $0xb0] sm:$0xff] %vm1774, %v1927
  %2075 = vst.msk [vmem:[%s5 + $0xb8] sm:$0xff] %vm1774, %v1930
  %2076 = vst.msk [vmem:[%s5 + $0xc0] sm:$0xff] %vm1774, %v1933
  %2077 = vst.msk [vmem:[%s5 + $0xc8] sm:$0xff] %vm1774, %v1936
  %2078 = vst.msk [vmem:[%s5 + $0xd0] sm:$0xff] %vm1774, %v1939
  %2079 = vst.msk [vmem:[%s5 + $0xd8] sm:$0xff] %vm1774, %v1942
  %2080 = vst.msk [vmem:[%s5 + $0xe0] sm:$0xff] %vm1774, %v1945
  %2081 = vst.msk [vmem:[%s5 + $0xe8] sm:$0xff] %vm1774, %v1948
  %2082 = vst.msk [vmem:[%s5 + $0xf0] sm:$0xff] %vm1774, %v1951
  %2083 = vst.msk [vmem:[%s5 + $0xf8] sm:$0xff] %vm1774, %v1954
  %2084 = vst.msk [vmem:[%s5 + $0x100] sm:$0xff] %vm1774, %v1957
  %2085 = vst.msk [vmem:[%s5 + $0x108] sm:$0xff] %vm1774, %v1960
  %2086 = vst.msk [vmem:[%s5 + $0x110] sm:$0xff] %vm1774, %v1963
  %2087 = vst.msk [vmem:[%s5 + $0x118] sm:$0xff] %vm1774, %v1966
  %2088 = vst.msk [vmem:[%s5 + $0x120] sm:$0xff] %vm1774, %v1969
  %2089 = vst.msk [vmem:[%s5 + $0x128] sm:$0xff] %vm1774, %v1972
  %2090 = vst.msk [vmem:[%s5 + $0x130] sm:$0xff] %vm1774, %v1975
  %2091 = vst.msk [vmem:[%s5 + $0x138] sm:$0xff] %vm1774, %v1978
  %2092 = vst.msk [vmem:[%s5 + $0x140] sm:$0xff] %vm1774, %v1981
  %2093 = vst.msk [vmem:[%s5 + $0x148] sm:$0xff] %vm1774, %v1984
  %2094 = vst.msk [vmem:[%s5 + $0x150] sm:$0xff] %vm1774, %v1987
  %2095 = vst.msk [vmem:[%s5 + $0x158] sm:$0xff] %vm1774, %v1990
  %2096 = vst.msk [vmem:[%s5 + $0x160] sm:$0xff] %vm1774, %v1993
  %2097 = vst.msk [vmem:[%s5 + $0x168] sm:$0xff] %vm1774, %v1996
  %2098 = vst.msk [vmem:[%s5 + $0x170] sm:$0xff] %vm1774, %v1999
  %2099 = vst.msk [vmem:[%s5 + $0x178] sm:$0xff] %vm1774, %v2002
  %2100 = vst.msk [vmem:[%s5 + $0x180] sm:$0xff] %vm1774, %v2005
  %2101 = vst.msk [vmem:[%s5 + $0x188] sm:$0xff] %vm1774, %v2008
  %2102 = vst.msk [vmem:[%s5 + $0x190] sm:$0xff] %vm1774, %v2011
  %2103 = vst.msk [vmem:[%s5 + $0x198] sm:$0xff] %vm1774, %v2014
  %2104 = vst.msk [vmem:[%s5 + $0x1a0] sm:$0xff] %vm1774, %v2017
  %2105 = vst.msk [vmem:[%s5 + $0x1a8] sm:$0xff] %vm1774, %v2020
  %2106 = vst.msk [vmem:[%s5 + $0x1b0] sm:$0xff] %vm1774, %v2023
  %2107 = vst.msk [vmem:[%s5 + $0x1b8] sm:$0xff] %vm1774, %v2026
  %2108 = vst.msk [vmem:[%s5 + $0x1c0] sm:$0xff] %vm1774, %v2029
  %2109 = vst.msk [vmem:[%s5 + $0x1c8] sm:$0xff] %vm1774, %v2032
  %2110 = vst.msk [vmem:[%s5 + $0x1d0] sm:$0xff] %vm1774, %v2035
  %2111 = vst.msk [vmem:[%s5 + $0x1d8] sm:$0xff] %vm1774, %v2038
  %2112 = vst.msk [vmem:[%s5 + $0x1e0] sm:$0xff] %vm1774, %v2041
  %2113 = vst.msk [vmem:[%s5 + $0x1e8] sm:$0xff] %vm1774, %v2044
  %2114 = vst.msk [vmem:[%s5 + $0x1f0] sm:$0xff] %vm1774, %v2047
  %2115 = vst.msk [vmem:[%s5 + $0x1f8] sm:$0xff] %vm1774, %v2050
  // Predicated region
  $region18: #{tpu_custom_call.1} parent=0 // pred_check
    _
  $region19: #{tpu_custom_call.1} parent=0 // pred_check_branch
    %2117 = sbr.rel (0) target = $region21
  $region20: #{tpu_custom_call.1} parent=0 // pred_region
    _
  $region21: #{tpu_custom_call.1} parent=0 // pred_fallthru
    _
  // Predicated region
  $region22: #{tpu_custom_call.1} parent=0 // pred_check
    _
  $region23: #{tpu_custom_call.1} parent=0 // pred_check_branch
    %2119 = sbr.rel (0) target = $region25
  $region24: #{tpu_custom_call.1} parent=0 // pred_region
    _
  $region25: #{tpu_custom_call.1} parent=0 // pred_fallthru
    _
  // Predicated region
  $region26: #{tpu_custom_call.1} parent=0 // pred_check
    _
  $region27: #{tpu_custom_call.1} parent=0 // pred_check_branch
    %2121 = sbr.rel (0) target = $region29
  $region28: #{tpu_custom_call.1} parent=0 // pred_region
    _
  $region29: #{tpu_custom_call.1} parent=0 // pred_fallthru
    _
  // Predicated region
  $region30: #{tpu_custom_call.1} parent=0 // pred_check
    _
  $region31: #{tpu_custom_call.1} parent=0 // pred_check_branch
    %2123 = sbr.rel (0) target = $region33
  $region32: #{tpu_custom_call.1} parent=0 // pred_region
    _
  $region33: #{tpu_custom_call.1} parent=0 // pred_fallthru
    _

</llo_original>
